<compile_context>
chip_gen: v7x
topology: tpu7x:2x2x1
jax: 0.10.0
libtpu: 0.0.40
codegen_flags: <defaults>
</compile_context>

<pallas_src>
import functools

import jax
import jax.numpy as jnp
import numpy as np
from jax import lax
from jax.experimental import pallas as pl
from jax.experimental.pallas import tpu as pltpu


def head_kernel(x_ref, w_ref, b_ref, c_ref, o_ref):
    """One (batch, token-tile) grid step; all T tasks handled inside the kernel.

    x_ref: (1, tn, H)  bf16   token tile (DMA'd once per grid step)
    w_ref: (T, H, H)   bf16   effective per-task weights (W_t^T + A_t B_t), VMEM-resident
    b_ref: (T, 1, H)   f32    per-task bias
    c_ref: (T, 1, H)   f32    per-task classifier row
    o_ref: (1, T, tn)  f32    logits, already in the (B, T, S) output layout
    """
    x = x_ref[0]                                   # (tn, H) bf16
    num_tasks = w_ref.shape[0]
    for t in range(num_tasks):                     # static unroll; T is small
        # MXU: bf16 x bf16 -> f32 accumulate
        h = jnp.dot(x, w_ref[t], preferred_element_type=jnp.float32)       # (tn, H)
        h = jnp.tanh(h + b_ref[t])                                          # (tn, H) f32
        # Classifier contraction as a matvec -> lane-dense (1, tn) result directly,
        # avoiding the sublane->lane relayout of jnp.sum(h * c, axis=-1).
        res = lax.dot_general(c_ref[t], h, (((1,), (1,)), ((), ())),
                              preferred_element_type=jnp.float32)           # (1, tn)
        o_ref[0, t, :] = res[0]


def _vmem_bytes(tn, H, T):
    bf2, f4 = 2, 4
    w = 2 * T * H * H * bf2      # resident per-task weights (worst case double-buffered)
    xb = 2 * tn * H * bf2        # token tile, double-buffered
    ob = 2 * T * tn * f4         # output tile, double-buffered
    bc = 2 * 2 * T * H * f4      # bias + classifier
    tmp = 2 * tn * H * f4        # f32 intermediates headroom
    return w + xb + ob + bc + tmp


def _pick_token_tile(S, H, T, budget_bytes=48 << 20):
    # Candidates: multiples of 128 that divide S (lane-dense, unmasked output stores),
    # plus S itself (full-extent block always satisfies the (8,128) rule). Largest wins.
    cands = sorted({m for m in range(128, S + 1, 128) if S % m == 0} | {S}, reverse=True)
    for tn in cands:
        if _vmem_bytes(tn, H, T) <= budget_bytes:
            return tn
    # TODO(synk): if T*H*H itself exceeds the VMEM budget, a task-tiled grid axis is needed.
    return cands[-1]


def prepare_params(dense_w, dense_b, lora_a, lora_b, classifier):
    """Fold the LoRA delta into the dense weight once, outside the per-call hot path.

    dense_w: (H*T, H), dense_b: (H*T,)   (torch nn.Linear layout: out x in)
    lora_a: (H, R, T), lora_b: (R, H, T)
    classifier: (H, T)
    """
    H, T = classifier.shape
    w3 = dense_w.reshape(T, H, H)                         # (T, i_out, h_in)
    delta = jnp.einsum('hrt,rit->thi', lora_a, lora_b)    # (T, h_in, i_out)
    w_eff = jnp.transpose(w3, (0, 2, 1)) + delta          # (T, H_in, H_out)
    w_eff = w_eff.astype(jnp.bfloat16)                    # bf16 operand for the MXU
    b3 = dense_b.reshape(T, 1, H).astype(jnp.float32)
    c3 = classifier.T.reshape(T, 1, H).astype(jnp.float32)
    return w_eff, b3, c3


@functools.partial(jax.jit, static_argnames=("token_tile",))
def lora_head_forward(hidden_state, w_eff, b3, c3, *, token_tile=None):
    """hidden_state: (B, S, H) f32  ->  (B, T, S) f32 logits (matches torch .permute(0,2,1))."""
    B, S, H = hidden_state.shape
    T = w_eff.shape[0]
    tn = _pick_token_tile(S, H, T) if token_tile is None else token_tile
    assert S % tn == 0  # TODO(synk): ragged sequence lengths need upstream padding.

    x = hidden_state.astype(jnp.bfloat16)
    vmem_limit = int(min(100 << 20, max(32 << 20, _vmem_bytes(tn, H, T) + (8 << 20))))

    out = pl.pallas_call(
        head_kernel,
        out_shape=jax.ShapeDtypeStruct((B, T, S), jnp.float32),
        grid_spec=pltpu.PrefetchScalarGridSpec(
            num_scalar_prefetch=0,
            grid=(B, S // tn),
            in_specs=[
                pl.BlockSpec((1, tn, H), lambda b, s: (b, s, 0)),   # x: read exactly once
                pl.BlockSpec((T, H, H), lambda b, s: (0, 0, 0)),    # weights: resident
                pl.BlockSpec((T, 1, H), lambda b, s: (0, 0, 0)),    # bias: resident
                pl.BlockSpec((T, 1, H), lambda b, s: (0, 0, 0)),    # classifier: resident
            ],
            out_specs=pl.BlockSpec((1, T, tn), lambda b, s: (b, 0, s)),
        ),
        compiler_params=pltpu.CompilerParams(
            dimension_semantics=("parallel", "parallel"),
            vmem_limit_bytes=vmem_limit),
    )(x, w_eff, b3, c3)
    return out


def reference_forward(hidden_state, dense_w, dense_b, lora_a, lora_b, classifier):
    """Pure-JAX f32 transcription of the PyTorch forward (dropout = identity)."""
    B, S, H = hidden_state.shape
    T = classifier.shape[1]
    hp = jnp.einsum('bsh,oh->bso', hidden_state, dense_w,
                    precision=lax.Precision.HIGHEST) + dense_b
    hp = hp.reshape(B, S, T, H)
    delta = jnp.einsum('hrl,ril->hil', lora_a, lora_b, precision=lax.Precision.HIGHEST)
    delta_out = jnp.einsum('bsh,hil->bsli', hidden_state, delta,
                           precision=lax.Precision.HIGHEST)
    hidden = jnp.tanh(hp + delta_out)
    out = jnp.einsum('bsth,ht->bst', hidden, classifier, precision=lax.Precision.HIGHEST)
    return jnp.transpose(out, (0, 2, 1))


if __name__ == "__main__":
    # Small deterministic config (H multiple of 128 so blocks are lane-aligned).
    B, S, H, T, R = 2, 16, 256, 4, 8

    key = jax.random.PRNGKey(0)
    k_x, k_w, k_b, k_a, k_lb, k_c = jax.random.split(key, 6)

    hidden_state = jax.random.normal(k_x, (B, S, H), dtype=jnp.float32)

    # Deterministic synthetic parameters (shapes from the module's __init__).
    # Note: torch inits lora_b to zeros; small random values here exercise the LoRA path
    # without changing forward semantics.
    dense_w = jax.random.uniform(k_w, (H * T, H), jnp.float32, minval=-0.05, maxval=0.05)
    dense_b = jax.random.uniform(k_b, (H * T,), jnp.float32, minval=-0.05, maxval=0.05)
    lora_a = jax.random.uniform(k_a, (H, R, T), jnp.float32, minval=-0.05, maxval=0.05)
    lora_b = jax.random.uniform(k_lb, (R, H, T), jnp.float32, minval=-0.05, maxval=0.05)
    classifier = jax.random.uniform(k_c, (H, T), jnp.float32, minval=-0.05, maxval=0.05)

    w_eff, b3, c3 = prepare_params(dense_w, dense_b, lora_a, lora_b, classifier)
    out = lora_head_forward(hidden_state, w_eff, b3, c3)
    out = jax.block_until_ready(out)

    ref = reference_forward(hidden_state, dense_w, dense_b, lora_a, lora_b, classifier)
    ref = jax.block_until_ready(ref)

    assert out.shape == (B, T, S), out.shape
    # bf16 matmul operands with f32 accumulation -> relaxed tolerance vs. pure-f32 reference.
    np.testing.assert_allclose(np.asarray(out), np.asarray(ref), rtol=3e-2, atol=3e-2)
    print("KERNEL_OK")
</pallas_src>

<mosaic_0001>
module attributes {stable_mosaic.version = 11 : i64} {
  func.func @head_kernel(%arg0: i32, %arg1: i32, %arg2: memref<1x16x256xbf16, #tpu.memory_space<vmem>>, %arg3: memref<4x256x256xbf16, #tpu.memory_space<vmem>>, %arg4: memref<4x1x256xf32, #tpu.memory_space<vmem>>, %arg5: memref<4x1x256xf32, #tpu.memory_space<vmem>>, %arg6: memref<1x4x16xf32, #tpu.memory_space<vmem>>) attributes {dimension_semantics = [#tpu.dimension_semantics<parallel>, #tpu.dimension_semantics<parallel>], iteration_bounds = array<i64: 2, 1>, scalar_prefetch = 0 : i64, scratch_operands = 0 : i64, tpu.core_type = #tpu.core_type<tc>, window_params = [{transform_indices = @transform_0, window_bounds = array<i64: 1, 16, 256>}, {pipeline_mode = #tpu.pipeline_mode<synchronous>, transform_indices = @transform_1, window_bounds = array<i64: 4, 256, 256>}, {pipeline_mode = #tpu.pipeline_mode<synchronous>, transform_indices = @transform_2, window_bounds = array<i64: 4, 1, 256>}, {pipeline_mode = #tpu.pipeline_mode<synchronous>, transform_indices = @transform_3, window_bounds = array<i64: 4, 1, 256>}, {transform_indices = @transform_4, window_bounds = array<i64: 1, 4, 16>}]} {
    %c0 = arith.constant 0 : index
    %c0_0 = arith.constant 0 : index
    %c0_1 = arith.constant 0 : index
    %0 = vector.load %arg2[%c0, %c0_0, %c0_1] : memref<1x16x256xbf16, #tpu.memory_space<vmem>>, vector<1x16x256xbf16>
    %1 = vector.shape_cast %0 : vector<1x16x256xbf16> to vector<16x256xbf16>
    %c0_2 = arith.constant 0 : index
    %c0_3 = arith.constant 0 : index
    %c0_4 = arith.constant 0 : index
    %2 = vector.load %arg3[%c0_2, %c0_3, %c0_4] : memref<4x256x256xbf16, #tpu.memory_space<vmem>>, vector<1x256x256xbf16>
    %3 = vector.shape_cast %2 : vector<1x256x256xbf16> to vector<256x256xbf16>
    %cst = arith.constant dense<0.000000e+00> : vector<16x256xf32>
    %4 = tpu.matmul %1, %3, %cst {dimension_numbers = #tpu.dot_dimension_numbers<[1], [0], [0], [1], [0, 0, 1, 1], [], []>} : vector<16x256xbf16>, vector<256x256xbf16>, vector<16x256xf32> -> vector<16x256xf32>
    %c0_5 = arith.constant 0 : index
    %c0_6 = arith.constant 0 : index
    %c0_7 = arith.constant 0 : index
    %5 = vector.load %arg4[%c0_5, %c0_6, %c0_7] : memref<4x1x256xf32, #tpu.memory_space<vmem>>, vector<1x1x256xf32>
    %6 = vector.shape_cast %5 : vector<1x1x256xf32> to vector<1x256xf32>
    %7 = vector.broadcast %6 : vector<1x256xf32> to vector<16x256xf32>
    %8 = arith.addf %4, %7 : vector<16x256xf32>
    %9 = math.tanh %8 : vector<16x256xf32>
    %c0_8 = arith.constant 0 : index
    %c0_9 = arith.constant 0 : index
    %c0_10 = arith.constant 0 : index
    %10 = vector.load %arg5[%c0_8, %c0_9, %c0_10] : memref<4x1x256xf32, #tpu.memory_space<vmem>>, vector<1x1x256xf32>
    %11 = vector.shape_cast %10 : vector<1x1x256xf32> to vector<1x256xf32>
    %cst_11 = arith.constant dense<0.000000e+00> : vector<1x16xf32>
    %12 = tpu.matmul %11, %9, %cst_11 {dimension_numbers = #tpu.dot_dimension_numbers<[1], [1], [0], [0], [0, 0, 1, 0], [], []>} : vector<1x256xf32>, vector<16x256xf32>, vector<1x16xf32> -> vector<1x16xf32>
    %13 = vector.shape_cast %12 : vector<1x16xf32> to vector<16xf32>
    %c0_12 = arith.constant 0 : index
    %c0_13 = arith.constant 0 : index
    %c0_14 = arith.constant 0 : index
    %14 = vector.load %arg6[%c0_12, %c0_13, %c0_14] : memref<1x4x16xf32, #tpu.memory_space<vmem>>, vector<1x1x16xf32>
    %15 = vector.shape_cast %14 : vector<1x1x16xf32> to vector<16xf32>
    %16 = vector.shape_cast %13 : vector<16xf32> to vector<1x1x16xf32>
    tpu.vector_store %arg6[%c0_12, %c0_13, %c0_14], %16 {strides = array<i32>} : memref<1x4x16xf32, #tpu.memory_space<vmem>>, vector<1x1x16xf32>,
    %c1 = arith.constant 1 : index
    %c0_15 = arith.constant 0 : index
    %c0_16 = arith.constant 0 : index
    %17 = vector.load %arg3[%c1, %c0_15, %c0_16] : memref<4x256x256xbf16, #tpu.memory_space<vmem>>, vector<1x256x256xbf16>
    %18 = vector.shape_cast %17 : vector<1x256x256xbf16> to vector<256x256xbf16>
    %cst_17 = arith.constant dense<0.000000e+00> : vector<16x256xf32>
    %19 = tpu.matmul %1, %18, %cst_17 {dimension_numbers = #tpu.dot_dimension_numbers<[1], [0], [0], [1], [0, 0, 1, 1], [], []>} : vector<16x256xbf16>, vector<256x256xbf16>, vector<16x256xf32> -> vector<16x256xf32>
    %c1_18 = arith.constant 1 : index
    %c0_19 = arith.constant 0 : index
    %c0_20 = arith.constant 0 : index
    %20 = vector.load %arg4[%c1_18, %c0_19, %c0_20] : memref<4x1x256xf32, #tpu.memory_space<vmem>>, vector<1x1x256xf32>
    %21 = vector.shape_cast %20 : vector<1x1x256xf32> to vector<1x256xf32>
    %22 = vector.broadcast %21 : vector<1x256xf32> to vector<16x256xf32>
    %23 = arith.addf %19, %22 : vector<16x256xf32>
    %24 = math.tanh %23 : vector<16x256xf32>
    %c1_21 = arith.constant 1 : index
    %c0_22 = arith.constant 0 : index
    %c0_23 = arith.constant 0 : index
    %25 = vector.load %arg5[%c1_21, %c0_22, %c0_23] : memref<4x1x256xf32, #tpu.memory_space<vmem>>, vector<1x1x256xf32>
    %26 = vector.shape_cast %25 : vector<1x1x256xf32> to vector<1x256xf32>
    %cst_24 = arith.constant dense<0.000000e+00> : vector<1x16xf32>
    %27 = tpu.matmul %26, %24, %cst_24 {dimension_numbers = #tpu.dot_dimension_numbers<[1], [1], [0], [0], [0, 0, 1, 0], [], []>} : vector<1x256xf32>, vector<16x256xf32>, vector<1x16xf32> -> vector<1x16xf32>
    %28 = vector.shape_cast %27 : vector<1x16xf32> to vector<16xf32>
    %c0_25 = arith.constant 0 : index
    %c1_26 = arith.constant 1 : index
    %c0_27 = arith.constant 0 : index
    %29 = vector.load %arg6[%c0_25, %c1_26, %c0_27] : memref<1x4x16xf32, #tpu.memory_space<vmem>>, vector<1x1x16xf32>
    %30 = vector.shape_cast %29 : vector<1x1x16xf32> to vector<16xf32>
    %31 = vector.shape_cast %28 : vector<16xf32> to vector<1x1x16xf32>
    tpu.vector_store %arg6[%c0_25, %c1_26, %c0_27], %31 {strides = array<i32>} : memref<1x4x16xf32, #tpu.memory_space<vmem>>, vector<1x1x16xf32>,
    %c2 = arith.constant 2 : index
    %c0_28 = arith.constant 0 : index
    %c0_29 = arith.constant 0 : index
    %32 = vector.load %arg3[%c2, %c0_28, %c0_29] : memref<4x256x256xbf16, #tpu.memory_space<vmem>>, vector<1x256x256xbf16>
    %33 = vector.shape_cast %32 : vector<1x256x256xbf16> to vector<256x256xbf16>
    %cst_30 = arith.constant dense<0.000000e+00> : vector<16x256xf32>
    %34 = tpu.matmul %1, %33, %cst_30 {dimension_numbers = #tpu.dot_dimension_numbers<[1], [0], [0], [1], [0, 0, 1, 1], [], []>} : vector<16x256xbf16>, vector<256x256xbf16>, vector<16x256xf32> -> vector<16x256xf32>
    %c2_31 = arith.constant 2 : index
    %c0_32 = arith.constant 0 : index
    %c0_33 = arith.constant 0 : index
    %35 = vector.load %arg4[%c2_31, %c0_32, %c0_33] : memref<4x1x256xf32, #tpu.memory_space<vmem>>, vector<1x1x256xf32>
    %36 = vector.shape_cast %35 : vector<1x1x256xf32> to vector<1x256xf32>
    %37 = vector.broadcast %36 : vector<1x256xf32> to vector<16x256xf32>
    %38 = arith.addf %34, %37 : vector<16x256xf32>
    %39 = math.tanh %38 : vector<16x256xf32>
    %c2_34 = arith.constant 2 : index
    %c0_35 = arith.constant 0 : index
    %c0_36 = arith.constant 0 : index
    %40 = vector.load %arg5[%c2_34, %c0_35, %c0_36] : memref<4x1x256xf32, #tpu.memory_space<vmem>>, vector<1x1x256xf32>
    %41 = vector.shape_cast %40 : vector<1x1x256xf32> to vector<1x256xf32>
    %cst_37 = arith.constant dense<0.000000e+00> : vector<1x16xf32>
    %42 = tpu.matmul %41, %39, %cst_37 {dimension_numbers = #tpu.dot_dimension_numbers<[1], [1], [0], [0], [0, 0, 1, 0], [], []>} : vector<1x256xf32>, vector<16x256xf32>, vector<1x16xf32> -> vector<1x16xf32>
    %43 = vector.shape_cast %42 : vector<1x16xf32> to vector<16xf32>
    %c0_38 = arith.constant 0 : index
    %c2_39 = arith.constant 2 : index
    %c0_40 = arith.constant 0 : index
    %44 = vector.load %arg6[%c0_38, %c2_39, %c0_40] : memref<1x4x16xf32, #tpu.memory_space<vmem>>, vector<1x1x16xf32>
    %45 = vector.shape_cast %44 : vector<1x1x16xf32> to vector<16xf32>
    %46 = vector.shape_cast %43 : vector<16xf32> to vector<1x1x16xf32>
    tpu.vector_store %arg6[%c0_38, %c2_39, %c0_40], %46 {strides = array<i32>} : memref<1x4x16xf32, #tpu.memory_space<vmem>>, vector<1x1x16xf32>,
    %c3 = arith.constant 3 : index
    %c0_41 = arith.constant 0 : index
    %c0_42 = arith.constant 0 : index
    %47 = vector.load %arg3[%c3, %c0_41, %c0_42] : memref<4x256x256xbf16, #tpu.memory_space<vmem>>, vector<1x256x256xbf16>
    %48 = vector.shape_cast %47 : vector<1x256x256xbf16> to vector<256x256xbf16>
    %cst_43 = arith.constant dense<0.000000e+00> : vector<16x256xf32>
    %49 = tpu.matmul %1, %48, %cst_43 {dimension_numbers = #tpu.dot_dimension_numbers<[1], [0], [0], [1], [0, 0, 1, 1], [], []>} : vector<16x256xbf16>, vector<256x256xbf16>, vector<16x256xf32> -> vector<16x256xf32>
    %c3_44 = arith.constant 3 : index
    %c0_45 = arith.constant 0 : index
    %c0_46 = arith.constant 0 : index
    %50 = vector.load %arg4[%c3_44, %c0_45, %c0_46] : memref<4x1x256xf32, #tpu.memory_space<vmem>>, vector<1x1x256xf32>
    %51 = vector.shape_cast %50 : vector<1x1x256xf32> to vector<1x256xf32>
    %52 = vector.broadcast %51 : vector<1x256xf32> to vector<16x256xf32>
    %53 = arith.addf %49, %52 : vector<16x256xf32>
    %54 = math.tanh %53 : vector<16x256xf32>
    %c3_47 = arith.constant 3 : index
    %c0_48 = arith.constant 0 : index
    %c0_49 = arith.constant 0 : index
    %55 = vector.load %arg5[%c3_47, %c0_48, %c0_49] : memref<4x1x256xf32, #tpu.memory_space<vmem>>, vector<1x1x256xf32>
    %56 = vector.shape_cast %55 : vector<1x1x256xf32> to vector<1x256xf32>
    %cst_50 = arith.constant dense<0.000000e+00> : vector<1x16xf32>
    %57 = tpu.matmul %56, %54, %cst_50 {dimension_numbers = #tpu.dot_dimension_numbers<[1], [1], [0], [0], [0, 0, 1, 0], [], []>} : vector<1x256xf32>, vector<16x256xf32>, vector<1x16xf32> -> vector<1x16xf32>
    %58 = vector.shape_cast %57 : vector<1x16xf32> to vector<16xf32>
    %c0_51 = arith.constant 0 : index
    %c3_52 = arith.constant 3 : index
    %c0_53 = arith.constant 0 : index
    %59 = vector.load %arg6[%c0_51, %c3_52, %c0_53] : memref<1x4x16xf32, #tpu.memory_space<vmem>>, vector<1x1x16xf32>
    %60 = vector.shape_cast %59 : vector<1x1x16xf32> to vector<16xf32>
    %61 = vector.shape_cast %58 : vector<16xf32> to vector<1x1x16xf32>
    tpu.vector_store %arg6[%c0_51, %c3_52, %c0_53], %61 {strides = array<i32>} : memref<1x4x16xf32, #tpu.memory_space<vmem>>, vector<1x1x16xf32>,
    return
  }
  func.func @transform_0(%arg0: i32, %arg1: i32) -> (i32, i32, i32) {
    %c0_i32 = arith.constant 0 : i32
    %c0_i32_0 = arith.constant 0 : i32
    return %arg0, %arg1, %c0_i32 : i32, i32, i32
  }
  func.func @transform_1(%arg0: i32, %arg1: i32) -> (i32, i32, i32) {
    %c0_i32 = arith.constant 0 : i32
    %c0_i32_0 = arith.constant 0 : i32
    %c0_i32_1 = arith.constant 0 : i32
    %c0_i32_2 = arith.constant 0 : i32
    return %c0_i32, %c0_i32_0, %c0_i32_1 : i32, i32, i32
  }
  func.func @transform_2(%arg0: i32, %arg1: i32) -> (i32, i32, i32) {
    %c0_i32 = arith.constant 0 : i32
    %c0_i32_0 = arith.constant 0 : i32
    %c0_i32_1 = arith.constant 0 : i32
    %c0_i32_2 = arith.constant 0 : i32
    return %c0_i32, %c0_i32_0, %c0_i32_1 : i32, i32, i32
  }
  func.func @transform_3(%arg0: i32, %arg1: i32) -> (i32, i32, i32) {
    %c0_i32 = arith.constant 0 : i32
    %c0_i32_0 = arith.constant 0 : i32
    %c0_i32_1 = arith.constant 0 : i32
    %c0_i32_2 = arith.constant 0 : i32
    return %c0_i32, %c0_i32_0, %c0_i32_1 : i32, i32, i32
  }
  func.func @transform_4(%arg0: i32, %arg1: i32) -> (i32, i32, i32) {
    %c0_i32 = arith.constant 0 : i32
    %c0_i32_0 = arith.constant 0 : i32
    return %arg0, %c0_i32, %arg1 : i32, i32, i32
  }
}

</mosaic_0001>

<llo_original>
// kernel: lora_head_forward.1
$region0: #{lora_head_forward.1}
  #allocation0 [shape = 'u32[]', space=smem, size = 0x4, offset = 0x4, fixed_abs, tag = 'smem constant byte address 0x4 - core index']
  #allocation1 [shape = 'u32[144,128]{1,0:T(1,128)}', space=vmem, size = 0x12000, scoped, tag = 'internal scratch']
  %s0 = inlined_call_operand.vmem [shape: bf16[2,16,256], index: 0, kind: input, shape index: {}]
  %s1 = inlined_call_operand.hbm [shape: bf16[4,256,256], index: 1, kind: input, shape index: {}]
  %s2 = inlined_call_operand.vmem [shape: f32[4,1,256], index: 2, kind: input, shape index: {}]
  %s3 = inlined_call_operand.vmem [shape: f32[4,1,256], index: 3, kind: input, shape index: {}]
  %s4 = inlined_call_operand.hbm [shape: f32[2,4,16], index: 4, kind: output, shape index: {}]
  %s5 = sld [smem:[#allocation0]]
  $region53: #{lora_head_forward.1} parent=0
    _
  %s7 = ssub.s32 1, %s5
  %s8 = scalar_select 0, %s7, %s5
  $region1: #{lora_head_forward.1} parent=0
    #allocation2 [shape = 'u8[524288]{0}', space=vmem, size = 0x80000, scoped, tag = 'input window, operand 1, single buffered']
    #allocation3 [shape = 's32[2]{0}', space=sflag, size = 0x8, scoped, tag = 'scoped memory for lora_head_forward.1']
    #allocation4 [shape = 's32[2]{0}', space=sflag, size = 0x8, scoped, tag = 'scoped memory for lora_head_forward.1']
    #allocation5 [shape = 'u8[4096]{0}', space=vmem, size = 0x1000, scoped, tag = 'output window, operand 0']
    %9 = vsyncpa [#allocation3], 0
    %10 = vsyncpa [#allocation4], 0
    %s11 = scalar_lea.sflag [#allocation4], 1
    %12 = vsyncpa %s11, 0
    loop: start=0, step=1, limit=4
    $region2: #{lora_head_forward.1} parent=1 // loop_pre_header
      _
    $region3: #{lora_head_forward.1} parent=1 // loop_header
      %s14 = sphi 0, %s18
      %p15 = scmp.ge.s32.totalorder %s14, 4
      %s21 = sphi 0, %s33
      %s22 = sphi 0, %s29
      %s23 = sphi 0, %s21
      %s24 = sphi 0, %s22
      %s25 = sphi 0, %s23
      %s26 = sphi 0, %s24
      %s38 = sphi 0, %s40
      %s41 = sphi 0, %s38
      %s42 = sphi 0, %s41
      %s58 = sphi 0, %s42
      %s62 = sphi 0, %s62
      %s64 = sphi 0, %s62
      %s65 = sphi 0, %s64
      %s79 = sphi 0, %s65
      %s83 = sphi 0, %s83
      %s85 = sphi 0, %s83
      %s86 = sphi 0, %s85
      %s100 = sphi 0, %s86
      %s104 = sphi 0, %s104
      %s106 = sphi 0, %s104
      %s107 = sphi 0, %s106
      %s121 = sphi 0, %s107
      %s129 = sphi 0, %s131
      %s132 = sphi 0, %s129
      %s133 = sphi 0, %s132
      %s149 = sphi 0, %s133
    $region4: #{lora_head_forward.1} parent=1 // loop_header_branch
      %17 = sbr.rel (%p15) target = $region8
    $region5: #{lora_head_forward.1} parent=1 // loop_body
      %s19 = ssub.s32 %s14, 1
      %s20 = ssub.s32 %s14, 2
      %s27 = sadd.s32 1, %s22
      %p28 = scmp.ge.s32.totalorder %s27, 1
      %s29 = scalar_select %p28, 0, %s27
      %s30 = sadd.s32 1, %s21
      %s31 = scalar_select %p28, %s30, %s21
      %p32 = scmp.ge.s32.totalorder %s31, 2
      %s33 = scalar_select %p32, 0, %s31
      %s34 = ssub.s32 %s21, %s33
      %s35 = ssub.s32 %s22, %s29
      %s36 = sor.u32 %s34, %s35
      %p37 = scmp.eq.s32.totalorder %s36, 0
      %s39 = sadd.s32 %s38, 1
      %s40 = scalar_select %p37, %s38, %s39
      %p43 = pneg %p37
      %p44 = scmp.eq.s32.totalorder %s14, 1
      %p45 = por %p43, %p44
      %p46 = scmp.ne.s32.totalorder %s38, %s41
      %p47 = scmp.eq.s32.totalorder %s14, 0
      %p48 = por %p46, %p47
      %p49 = scmp.ne.s32.totalorder %s38, %s41
      %p50 = scmp.eq.s32.totalorder %s19, 1
      %p51 = por %p49, %p50
      %p52 = scmp.ne.s32.totalorder %s41, %s42
      %p53 = scmp.eq.s32.totalorder %s19, 0
      %p54 = por %p52, %p53
      %p55 = scmp.ne.s32.totalorder %s41, %s42
      %p56 = scmp.eq.s32.totalorder %s20, 1
      %p57 = por %p55, %p56
      %p59 = scmp.ne.s32.totalorder %s42, %s58
      %p60 = scmp.eq.s32.totalorder %s20, 0
      %p61 = por %p59, %p60
      %s63 = sadd.s32 %s62, 1
      %p66 = scmp.eq.s32.totalorder %s14, 1
      %p67 = scmp.ne.s32.totalorder %s62, %s64
      %p68 = scmp.eq.s32.totalorder %s14, 0
      %p69 = por %p67, %p68
      %p70 = scmp.ne.s32.totalorder %s62, %s64
      %p71 = scmp.eq.s32.totalorder %s19, 1
      %p72 = por %p70, %p71
      %p73 = scmp.ne.s32.totalorder %s64, %s65
      %p74 = scmp.eq.s32.totalorder %s19, 0
      %p75 = por %p73, %p74
      %p76 = scmp.ne.s32.totalorder %s64, %s65
      %p77 = scmp.eq.s32.totalorder %s20, 1
      %p78 = por %p76, %p77
      %p80 = scmp.ne.s32.totalorder %s65, %s79
      %p81 = scmp.eq.s32.totalorder %s20, 0
      %p82 = por %p80, %p81
      %s84 = sadd.s32 %s83, 1
      %p87 = scmp.eq.s32.totalorder %s14, 1
      %p88 = scmp.ne.s32.totalorder %s83, %s85
      %p89 = scmp.eq.s32.totalorder %s14, 0
      %p90 = por %p88, %p89
      %p91 = scmp.ne.s32.totalorder %s83, %s85
      %p92 = scmp.eq.s32.totalorder %s19, 1
      %p93 = por %p91, %p92
      %p94 = scmp.ne.s32.totalorder %s85, %s86
      %p95 = scmp.eq.s32.totalorder %s19, 0
      %p96 = por %p94, %p95
      %p97 = scmp.ne.s32.totalorder %s85, %s86
      %p98 = scmp.eq.s32.totalorder %s20, 1
      %p99 = por %p97, %p98
      %p101 = scmp.ne.s32.totalorder %s86, %s100
      %p102 = scmp.eq.s32.totalorder %s20, 0
      %p103 = por %p101, %p102
      %s105 = sadd.s32 %s104, 1
      %p108 = scmp.eq.s32.totalorder %s14, 1
      %p109 = scmp.ne.s32.totalorder %s104, %s106
      %p110 = scmp.eq.s32.totalorder %s14, 0
      %p111 = por %p109, %p110
      %p112 = scmp.ne.s32.totalorder %s104, %s106
      %p113 = scmp.eq.s32.totalorder %s19, 1
      %p114 = por %p112, %p113
      %p115 = scmp.ne.s32.totalorder %s106, %s107
      %p116 = scmp.eq.s32.totalorder %s19, 0
      %p117 = por %p115, %p116
      %p118 = scmp.ne.s32.totalorder %s106, %s107
      %p119 = scmp.eq.s32.totalorder %s20, 1
      %p120 = por %p118, %p119
      %p122 = scmp.ne.s32.totalorder %s107, %s121
      %p123 = scmp.eq.s32.totalorder %s20, 0
      %p124 = por %p122, %p123
      %s125 = ssub.s32 %s21, %s33
      %s126 = ssub.s32 %s22, %s29
      %s127 = sor.u32 %s125, %s126
      %p128 = scmp.eq.s32.totalorder %s127, 0
      %s130 = sadd.s32 %s129, 1
      %s131 = scalar_select %p128, %s129, %s130
      %p134 = pneg %p128
      %p135 = scmp.eq.s32.totalorder %s14, 1
      %p136 = por %p134, %p135
      %p137 = scmp.ne.s32.totalorder %s129, %s132
      %p138 = scmp.eq.s32.totalorder %s14, 0
      %p139 = por %p137, %p138
      %p140 = scmp.ne.s32.totalorder %s129, %s132
      %p141 = scmp.eq.s32.totalorder %s19, 1
      %p142 = por %p140, %p141
      %p143 = scmp.ne.s32.totalorder %s132, %s133
      %p144 = scmp.eq.s32.totalorder %s19, 0
      %p145 = por %p143, %p144
      %p146 = scmp.ne.s32.totalorder %s132, %s133
      %p147 = scmp.eq.s32.totalorder %s20, 1
      %p148 = por %p146, %p147
      %p150 = scmp.ne.s32.totalorder %s133, %s149
      %p151 = scmp.eq.s32.totalorder %s20, 0
      %p152 = por %p150, %p151
      %p153 = scmp.le.s32.totalorder 1, %s14
      %p154 = scmp.lt.s32.totalorder %s14, 3
      %p155 = pnand %p153, %p154
      %p156 = pneg %p155
      // Predicated region
      $region9: #{lora_head_forward.1} parent=5 // pred_check
        _
      $region10: #{lora_head_forward.1} parent=5 // pred_check_branch
        %158 = sbr.rel (%p155) target = $region12
      $region11: #{lora_head_forward.1} parent=5 // pred_region
        %s159 = ssub.s32 %s14, 1
        // Predicated region
        $region13: #{lora_head_forward.1} parent=11 // pred_check
          %p160 = pneg %p75
        $region14: #{lora_head_forward.1} parent=11 // pred_check_branch
          %162 = sbr.rel (%p160) target = $region16
        $region15: #{lora_head_forward.1} parent=11 // pred_region
          %s164 = ssub.s32 16384, 16384
          %165 = vsyncadd [#allocation3], %s164
          %s166 = sshll.u32 [#allocation2], 4
          %s167 = int_to_ptr.vmem [resolvable:$true] %s166
          %172 = dma.hbm_to_vmem [thread:$0]  %s1, 16384, %s167, [#allocation3], 128, 128, 8
        $region16: #{lora_head_forward.1} parent=11 // pred_fallthru
          _
        // Predicated region
        $region17: #{lora_head_forward.1} parent=11 // pred_check
          %p173 = pneg %p96
        $region18: #{lora_head_forward.1} parent=11 // pred_check_branch
          %175 = sbr.rel (%p173) target = $region20
        $region19: #{lora_head_forward.1} parent=11 // pred_region
          _
        $region20: #{lora_head_forward.1} parent=11 // pred_fallthru
          _
        // Predicated region
        $region21: #{lora_head_forward.1} parent=11 // pred_check
          %p176 = pneg %p117
        $region22: #{lora_head_forward.1} parent=11 // pred_check_branch
          %178 = sbr.rel (%p176) target = $region24
        $region23: #{lora_head_forward.1} parent=11 // pred_region
          _
        $region24: #{lora_head_forward.1} parent=11 // pred_fallthru
          _
      $region12: #{lora_head_forward.1} parent=5 // pred_fallthru
        _
      %p179 = scmp.lt.s32.totalorder %s14, 2
      // Predicated region
      $region25: #{lora_head_forward.1} parent=5 // pred_check
        %p180 = pneg %p179
      $region26: #{lora_head_forward.1} parent=5 // pred_check_branch
        %182 = sbr.rel (%p180) target = $region28
      $region27: #{lora_head_forward.1} parent=5 // pred_region
        // Predicated region
        $region29: #{lora_head_forward.1} parent=27 // pred_check
          %p183 = pneg %p48
        $region30: #{lora_head_forward.1} parent=27 // pred_check_branch
          %185 = sbr.rel (%p183) target = $region32
        $region31: #{lora_head_forward.1} parent=27 // pred_region
          %s186 = smul.u32 2, %s22
          %p187 = scmp.lt.s32.totalorder %s21, 1
          %s188 = scalar_select %p187, %s21, 1
          %p189 = scmp.lt.s32.totalorder %s186, 1
          %s190 = scalar_select %p189, %s186, 1
          %s191 = smul.addr %s190, 2
          %s192 = smul.addr %s188, 4
          %s193 = sadd.s32 %s191, %s192
          %s194 = smul.addr %s193, 4
          %s195 = scalar_lea.vmem %s0, %s194
          %s196 = smul.u32 2, %s22
        $region32: #{lora_head_forward.1} parent=27 // pred_fallthru
          _
      $region28: #{lora_head_forward.1} parent=5 // pred_fallthru
        _
      %p197 = scmp.le.s32.totalorder 1, %s14
      %p198 = scmp.lt.s32.totalorder %s14, 3
      %p199 = pnand %p197, %p198
      %p200 = pneg %p199
      // Predicated region
      $region33: #{lora_head_forward.1} parent=5 // pred_check
        _
      $region34: #{lora_head_forward.1} parent=5 // pred_check_branch
        %202 = sbr.rel (%p199) target = $region36
      $region35: #{lora_head_forward.1} parent=5 // pred_region
        %s203 = ssub.s32 %s14, 1
        // Predicated region
        $region37: #{lora_head_forward.1} parent=35 // pred_check
          %p204 = pneg %p75
        $region38: #{lora_head_forward.1} parent=35 // pred_check_branch
          %206 = sbr.rel (%p204) target = $region40
        $region39: #{lora_head_forward.1} parent=35 // pred_region
          %207 = dma.done [#allocation3], 16384
        $region40: #{lora_head_forward.1} parent=35 // pred_fallthru
          _
        %s208 = smul.u32 2, %s24
        %p209 = scmp.lt.s32.totalorder %s23, 1
        %s210 = scalar_select %p209, %s23, 1
        %p211 = scmp.lt.s32.totalorder %s208, 1
        %s212 = scalar_select %p211, %s208, 1
        %s213 = smul.addr %s212, 2
        %s214 = smul.addr %s210, 4
        %s215 = sadd.s32 %s213, %s214
        %s216 = smul.addr %s215, 4
        %s217 = scalar_lea.vmem %s0, %s216
        %p218 = pneg %p54
        %p219 = pneg %p51
        %p220 = pneg %p75
        %p221 = pneg %p72
        %p222 = pneg %p96
        %p223 = pneg %p93
        %p224 = pneg %p117
        %p225 = pneg %p114
        %p226 = pneg %p145
        %p227 = pneg %p142
        %s228 = sand.u32 %s132, 1
        %s229 = scalar_lea.sflag [#allocation4], %s228
        %s230 = sand.u32 %s132, 1
        %s231 = smul.addr %s230, 4
        %s232 = scalar_lea.vmem [#allocation5], %s231
        %s233 = smul.u32 2, %s24
        %p234 = scmp.lt.s32.totalorder %s23, 1
        %s235 = scalar_select %p234, %s23, 1
        %p236 = scmp.lt.s32.totalorder %s233, 1
        %s237 = scalar_select %p236, %s233, 1
        %s238 = smul.addr %s237, 2
        %s239 = smul.addr %s235, 4
        %s240 = sadd.s32 %s238, %s239
        %s241 = smul.addr %s240, 4
        %s242 = scalar_lea.vmem %s0, %s241
        %s243 = smul.u32 2, %s24
        %v244 = vld [vmem:[%s242] sm:$0xff]
        %v245 = vld [vmem:[%s242 + $0x8] sm:$0xff]
        %v246 = vld [vmem:[#allocation2] sm:$0xff]
        %v247 = vld [vmem:[#allocation2 + $0x8] sm:$0xff]
        %v248 = vld [vmem:[#allocation2 + $0x10] sm:$0xff]
        %v249 = vld [vmem:[#allocation2 + $0x18] sm:$0xff]
        %v250 = vld [vmem:[#allocation2 + $0x20] sm:$0xff]
        %v251 = vld [vmem:[#allocation2 + $0x28] sm:$0xff]
        %v252 = vld [vmem:[#allocation2 + $0x30] sm:$0xff]
        %v253 = vld [vmem:[#allocation2 + $0x38] sm:$0xff]
        %v254 = vld [vmem:[#allocation2 + $0x40] sm:$0xff]
        %v255 = vld [vmem:[#allocation2 + $0x48] sm:$0xff]
        %v256 = vld [vmem:[#allocation2 + $0x50] sm:$0xff]
        %v257 = vld [vmem:[#allocation2 + $0x58] sm:$0xff]
        %v258 = vld [vmem:[#allocation2 + $0x60] sm:$0xff]
        %v259 = vld [vmem:[#allocation2 + $0x68] sm:$0xff]
        %v260 = vld [vmem:[#allocation2 + $0x70] sm:$0xff]
        %v261 = vld [vmem:[#allocation2 + $0x78] sm:$0xff]
        %v262 = vld [vmem:[#allocation2 + $0x80] sm:$0xff]
        %v263 = vld [vmem:[#allocation2 + $0x88] sm:$0xff]
        %v264 = vld [vmem:[#allocation2 + $0x90] sm:$0xff]
        %v265 = vld [vmem:[#allocation2 + $0x98] sm:$0xff]
        %v266 = vld [vmem:[#allocation2 + $0xa0] sm:$0xff]
        %v267 = vld [vmem:[#allocation2 + $0xa8] sm:$0xff]
        %v268 = vld [vmem:[#allocation2 + $0xb0] sm:$0xff]
        %v269 = vld [vmem:[#allocation2 + $0xb8] sm:$0xff]
        %v270 = vld [vmem:[#allocation2 + $0xc0] sm:$0xff]
        %v271 = vld [vmem:[#allocation2 + $0xc8] sm:$0xff]
        %v272 = vld [vmem:[#allocation2 + $0xd0] sm:$0xff]
        %v273 = vld [vmem:[#allocation2 + $0xd8] sm:$0xff]
        %v274 = vld [vmem:[#allocation2 + $0xe0] sm:$0xff]
        %v275 = vld [vmem:[#allocation2 + $0xe8] sm:$0xff]
        %v276 = vld [vmem:[#allocation2 + $0xf0] sm:$0xff]
        %v277 = vld [vmem:[#allocation2 + $0xf8] sm:$0xff]
        %v278 = vld [vmem:[%s2] sm:$0x3]
        %v280 = vlaneseq
        %v281 = vshrl.u32 %v280, 7
        %v282 = vsub.s32 0, %v281
        %v283 = vrot.slane %v278, %v282
        %v284 = vlaneseq
        %v285 = vshrl.u32 %v284, 7
        %v286 = vsub.s32 1, %v285
        %v287 = vrot.slane %v278, %v286
        %v292 = vunpack.c.l.b16 %v244
        %v293 = vunpack.c.h.b16 %v244
        %v294 = vunpack.c.l.b16 %v245
        %v295 = vunpack.c.h.b16 %v245
        %v296 = vpack.c.b16 %v294, %v292
        %v297 = vpack.c.b16 %v295, %v293
        %v332 = vunpack.c.l.b16 %v246
        %v333 = vunpack.c.h.b16 %v246
        %v334 = vunpack.c.l.b16 %v247
        %v335 = vunpack.c.h.b16 %v247
        %v336 = vunpack.c.l.b16 %v248
        %v337 = vunpack.c.h.b16 %v248
        %v338 = vunpack.c.l.b16 %v249
        %v339 = vunpack.c.h.b16 %v249
        %v340 = vunpack.c.l.b16 %v250
        %v341 = vunpack.c.h.b16 %v250
        %v342 = vunpack.c.l.b16 %v251
        %v343 = vunpack.c.h.b16 %v251
        %v344 = vunpack.c.l.b16 %v252
        %v345 = vunpack.c.h.b16 %v252
        %v346 = vunpack.c.l.b16 %v253
        %v347 = vunpack.c.h.b16 %v253
        %v348 = vunpack.c.l.b16 %v254
        %v349 = vunpack.c.h.b16 %v254
        %v350 = vunpack.c.l.b16 %v255
        %v351 = vunpack.c.h.b16 %v255
        %v352 = vunpack.c.l.b16 %v256
        %v353 = vunpack.c.h.b16 %v256
        %v354 = vunpack.c.l.b16 %v257
        %v355 = vunpack.c.h.b16 %v257
        %v356 = vunpack.c.l.b16 %v258
        %v357 = vunpack.c.h.b16 %v258
        %v358 = vunpack.c.l.b16 %v259
        %v359 = vunpack.c.h.b16 %v259
        %v360 = vunpack.c.l.b16 %v260
        %v361 = vunpack.c.h.b16 %v260
        %v362 = vunpack.c.l.b16 %v261
        %v363 = vunpack.c.h.b16 %v261
        %v364 = vunpack.c.l.b16 %v262
        %v365 = vunpack.c.h.b16 %v262
        %v366 = vunpack.c.l.b16 %v263
        %v367 = vunpack.c.h.b16 %v263
        %v368 = vunpack.c.l.b16 %v264
        %v369 = vunpack.c.h.b16 %v264
        %v370 = vunpack.c.l.b16 %v265
        %v371 = vunpack.c.h.b16 %v265
        %v372 = vunpack.c.l.b16 %v266
        %v373 = vunpack.c.h.b16 %v266
        %v374 = vunpack.c.l.b16 %v267
        %v375 = vunpack.c.h.b16 %v267
        %v376 = vunpack.c.l.b16 %v268
        %v377 = vunpack.c.h.b16 %v268
        %v378 = vunpack.c.l.b16 %v269
        %v379 = vunpack.c.h.b16 %v269
        %v380 = vunpack.c.l.b16 %v270
        %v381 = vunpack.c.h.b16 %v270
        %v382 = vunpack.c.l.b16 %v271
        %v383 = vunpack.c.h.b16 %v271
        %v384 = vunpack.c.l.b16 %v272
        %v385 = vunpack.c.h.b16 %v272
        %v386 = vunpack.c.l.b16 %v273
        %v387 = vunpack.c.h.b16 %v273
        %v388 = vunpack.c.l.b16 %v274
        %v389 = vunpack.c.h.b16 %v274
        %v390 = vunpack.c.l.b16 %v275
        %v391 = vunpack.c.h.b16 %v275
        %v392 = vunpack.c.l.b16 %v276
        %v393 = vunpack.c.h.b16 %v276
        %v394 = vunpack.c.l.b16 %v277
        %v395 = vunpack.c.h.b16 %v277
        %v396 = vpack.c.b16 %v334, %v332
        %v397 = vpack.c.b16 %v335, %v333
        %v398 = vpack.c.b16 %v338, %v336
        %v399 = vpack.c.b16 %v339, %v337
        %v400 = vpack.c.b16 %v342, %v340
        %v401 = vpack.c.b16 %v343, %v341
        %v402 = vpack.c.b16 %v346, %v344
        %v403 = vpack.c.b16 %v347, %v345
        %v404 = vpack.c.b16 %v350, %v348
        %v405 = vpack.c.b16 %v351, %v349
        %v406 = vpack.c.b16 %v354, %v352
        %v407 = vpack.c.b16 %v355, %v353
        %v408 = vpack.c.b16 %v358, %v356
        %v409 = vpack.c.b16 %v359, %v357
        %v410 = vpack.c.b16 %v362, %v360
        %v411 = vpack.c.b16 %v363, %v361
        %v412 = vpack.c.b16 %v366, %v364
        %v413 = vpack.c.b16 %v367, %v365
        %v414 = vpack.c.b16 %v370, %v368
        %v415 = vpack.c.b16 %v371, %v369
        %v416 = vpack.c.b16 %v374, %v372
        %v417 = vpack.c.b16 %v375, %v373
        %v418 = vpack.c.b16 %v378, %v376
        %v419 = vpack.c.b16 %v379, %v377
        %v420 = vpack.c.b16 %v382, %v380
        %v421 = vpack.c.b16 %v383, %v381
        %v422 = vpack.c.b16 %v386, %v384
        %v423 = vpack.c.b16 %v387, %v385
        %v424 = vpack.c.b16 %v390, %v388
        %v425 = vpack.c.b16 %v391, %v389
        %v426 = vpack.c.b16 %v394, %v392
        %v427 = vpack.c.b16 %v395, %v393
        %460 = vmatprep.subr.bf16.mxu0 %v397
        %461 = vmatpush1.bf16.msra.mxu0 %v396
        %462 = vmatprep.subr.bf16.mxu0 %v399
        %463 = vmatpush1.bf16.msra.mxu0 %v398
        %464 = vmatprep.subr.bf16.mxu0 %v401
        %465 = vmatpush1.bf16.msra.mxu0 %v400
        %466 = vmatprep.subr.bf16.mxu0 %v403
        %467 = vmatpush1.bf16.msra.mxu0 %v402
        %468 = vmatprep.subr.bf16.mxu0 %v405
        %469 = vmatpush1.bf16.msra.mxu0 %v404
        %470 = vmatprep.subr.bf16.mxu0 %v407
        %471 = vmatpush1.bf16.msra.mxu0 %v406
        %472 = vmatprep.subr.bf16.mxu0 %v409
        %473 = vmatpush1.bf16.msra.mxu0 %v408
        %474 = vmatprep.subr.bf16.mxu0 %v411
        %475 = vmatpush1.bf16.msra.mxu0 %v410
        %476 = vmatprep.subr.bf16.mxu0 %v413
        %477 = vmatpush1.bf16.msra.mxu0 %v412
        %478 = vmatprep.subr.bf16.mxu0 %v415
        %479 = vmatpush1.bf16.msra.mxu0 %v414
        %480 = vmatprep.subr.bf16.mxu0 %v417
        %481 = vmatpush1.bf16.msra.mxu0 %v416
        %482 = vmatprep.subr.bf16.mxu0 %v419
        %483 = vmatpush1.bf16.msra.mxu0 %v418
        %484 = vmatprep.subr.bf16.mxu0 %v421
        %485 = vmatpush1.bf16.msra.mxu0 %v420
        %486 = vmatprep.subr.bf16.mxu0 %v423
        %487 = vmatpush1.bf16.msra.mxu0 %v422
        %488 = vmatprep.subr.bf16.mxu0 %v425
        %489 = vmatpush1.bf16.msra.mxu0 %v424
        %490 = vmatprep.subr.bf16.mxu0 %v427
        %491 = vmatpush1.bf16.msra.mxu0 %v426
        %492 = vmatprep.mubr.bf16.mxu0 %v297
        %493 = vmatmul.mubr.bf16.gmra.mrb[0].mxu0 %v296
        %v494 = vpop.f32.mrb[0].mxu0
        %v495 = vadd.f32 %v283, %v494
        %v496 = vpop.f32.mrb[0].mxu0
        %v497 = vadd.f32 %v287, %v496
        %v498 = vpop.f32.mrb[0].mxu0
        %v499 = vadd.f32 %v283, %v498
        %v500 = vpop.f32.mrb[0].mxu0
        %v501 = vadd.f32 %v287, %v500
        %502 = vdwg.mxu0
        %v503 = vtanh.pop %v495
        %v504 = vtanh.pop %v497
        %v505 = vtanh.pop %v499
        %v506 = vtanh.pop %v501
        %v507 = vld [vmem:[%s3] sm:$0x3]
        %v509 = vlaneseq
        %v510 = vshrl.u32 %v509, 7
        %v511 = vsub.s32 0, %v510
        %v512 = vrot.slane %v507, %v511
        %v513 = vlaneseq
        %v514 = vshrl.u32 %v513, 7
        %v515 = vsub.s32 1, %v514
        %v516 = vrot.slane %v507, %v515
        %519 = vmatprep.subr.mxu0 %v504
        %520 = vmatpush1.xpose.msra.mxu0 %v503
        %521 = vmatprep.subr.mxu0 %v506
        %522 = vmatpush1.xpose.msra.mxu0 %v505
        %523 = vmatprep.subr.mxu0 0.0
        %524 = vmatpush1.xpose.msra.mxu0 0.0
        %525 = vmatprep.subr.mxu0 0.0
        %526 = vmatpush1.xpose.msra.mxu0 0.0
        %527 = vmatprep.subr.mxu0 0.0
        %528 = vmatpush1.xpose.msra.mxu0 0.0
        %529 = vmatprep.subr.mxu0 0.0
        %530 = vmatpush1.xpose.msra.mxu0 0.0
        %531 = vmatprep.subr.mxu0 0.0
        %532 = vmatpush1.xpose.msra.mxu0 0.0
        %533 = vmatprep.subr.mxu0 0.0
        %534 = vmatpush1.xpose.msra.mxu0 0.0
        %535 = vmatprep.subr.mxu0 0.0
        %536 = vmatpush1.xpose.msra.mxu0 0.0
        %537 = vmatprep.subr.mxu0 0.0
        %538 = vmatpush1.xpose.msra.mxu0 0.0
        %539 = vmatprep.subr.mxu0 0.0
        %540 = vmatpush1.xpose.msra.mxu0 0.0
        %541 = vmatprep.subr.mxu0 0.0
        %542 = vmatpush1.xpose.msra.mxu0 0.0
        %543 = vmatprep.subr.mxu0 0.0
        %544 = vmatpush1.xpose.msra.mxu0 0.0
        %545 = vmatprep.subr.mxu0 0.0
        %546 = vmatpush1.xpose.msra.mxu0 0.0
        %547 = vmatprep.subr.mxu0 0.0
        %548 = vmatpush1.xpose.msra.mxu0 0.0
        %549 = vmatprep.subr.mxu0 0.0
        %550 = vmatpush1.xpose.msra.mxu0 0.0
        %551 = vmatprep.subr.mxu0 0.0
        %552 = vmatpush1.xpose.msra.mxu0 0.0
        %553 = vmatprep.subr.mxu0 0.0
        %554 = vmatpush1.xpose.msra.mxu0 0.0
        %555 = vmatprep.subr.mxu0 0.0
        %556 = vmatpush1.xpose.msra.mxu0 0.0
        %557 = vmatprep.subr.mxu0 0.0
        %558 = vmatpush1.xpose.msra.mxu0 0.0
        %559 = vmatprep.subr.mxu0 0.0
        %560 = vmatpush1.xpose.msra.mxu0 0.0
        %561 = vmatprep.subr.mxu0 0.0
        %562 = vmatpush1.xpose.msra.mxu0 0.0
        %563 = vmatprep.subr.mxu0 0.0
        %564 = vmatpush1.xpose.msra.mxu0 0.0
        %565 = vmatprep.subr.mxu0 0.0
        %566 = vmatpush1.xpose.msra.mxu0 0.0
        %567 = vmatprep.subr.mxu0 0.0
        %568 = vmatpush1.xpose.msra.mxu0 0.0
        %569 = vmatprep.subr.mxu0 0.0
        %570 = vmatpush1.xpose.msra.mxu0 0.0
        %571 = vmatprep.subr.mxu0 0.0
        %572 = vmatpush1.xpose.msra.mxu0 0.0
        %573 = vmatprep.subr.mxu0 0.0
        %574 = vmatpush1.xpose.msra.mxu0 0.0
        %575 = vmatprep.subr.mxu0 0.0
        %576 = vmatpush1.xpose.msra.mxu0 0.0
        %577 = vmatprep.subr.mxu0 0.0
        %578 = vmatpush1.xpose.msra.mxu0 0.0
        %579 = vmatprep.subr.mxu0 0.0
        %580 = vmatpush1.xpose.msra.mxu0 0.0
        %581 = vmatprep.subr.mxu0 0.0
        %582 = vmatpush1.xpose.msra.mxu0 0.0
        %583 = vmatprep.mubr.f32.mxu0 %v516
        %584 = vmatmul.mubr.f32.gmra.mrb[0].mxu0 %v512
        %v585 = vpop.f32.mrb[0].mxu0
        %v586 = vadd.f32 0.0, %v585
        %v587 = vpop.f32.mrb[0].mxu0
        %588 = vdwg.mxu0
        %vm589 = vcmask 122880
        %590 = vst.msk [vmem:[%s232] sm:$0x1] %vm589, %v586
        %s591 = scalar_lea.vmem [#allocation2], 256
        %v592 = vld [vmem:[%s591] sm:$0xff]
        %v593 = vld [vmem:[%s591 + $0x8] sm:$0xff]
        %v594 = vld [vmem:[%s591 + $0x10] sm:$0xff]
        %v595 = vld [vmem:[%s591 + $0x18] sm:$0xff]
        %v596 = vld [vmem:[%s591 + $0x20] sm:$0xff]
        %v597 = vld [vmem:[%s591 + $0x28] sm:$0xff]
        %v598 = vld [vmem:[%s591 + $0x30] sm:$0xff]
        %v599 = vld [vmem:[%s591 + $0x38] sm:$0xff]
        %v600 = vld [vmem:[%s591 + $0x40] sm:$0xff]
        %v601 = vld [vmem:[%s591 + $0x48] sm:$0xff]
        %v602 = vld [vmem:[%s591 + $0x50] sm:$0xff]
        %v603 = vld [vmem:[%s591 + $0x58] sm:$0xff]
        %v604 = vld [vmem:[%s591 + $0x60] sm:$0xff]
        %v605 = vld [vmem:[%s591 + $0x68] sm:$0xff]
        %v606 = vld [vmem:[%s591 + $0x70] sm:$0xff]
        %v607 = vld [vmem:[%s591 + $0x78] sm:$0xff]
        %v608 = vld [vmem:[%s591 + $0x80] sm:$0xff]
        %v609 = vld [vmem:[%s591 + $0x88] sm:$0xff]
        %v610 = vld [vmem:[%s591 + $0x90] sm:$0xff]
        %v611 = vld [vmem:[%s591 + $0x98] sm:$0xff]
        %v612 = vld [vmem:[%s591 + $0xa0] sm:$0xff]
        %v613 = vld [vmem:[%s591 + $0xa8] sm:$0xff]
        %v614 = vld [vmem:[%s591 + $0xb0] sm:$0xff]
        %v615 = vld [vmem:[%s591 + $0xb8] sm:$0xff]
        %v616 = vld [vmem:[%s591 + $0xc0] sm:$0xff]
        %v617 = vld [vmem:[%s591 + $0xc8] sm:$0xff]
        %v618 = vld [vmem:[%s591 + $0xd0] sm:$0xff]
        %v619 = vld [vmem:[%s591 + $0xd8] sm:$0xff]
        %v620 = vld [vmem:[%s591 + $0xe0] sm:$0xff]
        %v621 = vld [vmem:[%s591 + $0xe8] sm:$0xff]
        %v622 = vld [vmem:[%s591 + $0xf0] sm:$0xff]
        %v623 = vld [vmem:[%s591 + $0xf8] sm:$0xff]
        %s624 = scalar_lea.vmem %s2, 2
        %v625 = vld [vmem:[%s624] sm:$0x3]
        %v627 = vlaneseq
        %v628 = vshrl.u32 %v627, 7
        %v629 = vsub.s32 0, %v628
        %v630 = vrot.slane %v625, %v629
        %v631 = vlaneseq
        %v632 = vshrl.u32 %v631, 7
        %v633 = vsub.s32 1, %v632
        %v634 = vrot.slane %v625, %v633
        %v669 = vunpack.c.l.b16 %v592
        %v670 = vunpack.c.h.b16 %v592
        %v671 = vunpack.c.l.b16 %v593
        %v672 = vunpack.c.h.b16 %v593
        %v673 = vunpack.c.l.b16 %v594
        %v674 = vunpack.c.h.b16 %v594
        %v675 = vunpack.c.l.b16 %v595
        %v676 = vunpack.c.h.b16 %v595
        %v677 = vunpack.c.l.b16 %v596
        %v678 = vunpack.c.h.b16 %v596
        %v679 = vunpack.c.l.b16 %v597
        %v680 = vunpack.c.h.b16 %v597
        %v681 = vunpack.c.l.b16 %v598
        %v682 = vunpack.c.h.b16 %v598
        %v683 = vunpack.c.l.b16 %v599
        %v684 = vunpack.c.h.b16 %v599
        %v685 = vunpack.c.l.b16 %v600
        %v686 = vunpack.c.h.b16 %v600
        %v687 = vunpack.c.l.b16 %v601
        %v688 = vunpack.c.h.b16 %v601
        %v689 = vunpack.c.l.b16 %v602
        %v690 = vunpack.c.h.b16 %v602
        %v691 = vunpack.c.l.b16 %v603
        %v692 = vunpack.c.h.b16 %v603
        %v693 = vunpack.c.l.b16 %v604
        %v694 = vunpack.c.h.b16 %v604
        %v695 = vunpack.c.l.b16 %v605
        %v696 = vunpack.c.h.b16 %v605
        %v697 = vunpack.c.l.b16 %v606
        %v698 = vunpack.c.h.b16 %v606
        %v699 = vunpack.c.l.b16 %v607
        %v700 = vunpack.c.h.b16 %v607
        %v701 = vunpack.c.l.b16 %v608
        %v702 = vunpack.c.h.b16 %v608
        %v703 = vunpack.c.l.b16 %v609
        %v704 = vunpack.c.h.b16 %v609
        %v705 = vunpack.c.l.b16 %v610
        %v706 = vunpack.c.h.b16 %v610
        %v707 = vunpack.c.l.b16 %v611
        %v708 = vunpack.c.h.b16 %v611
        %v709 = vunpack.c.l.b16 %v612
        %v710 = vunpack.c.h.b16 %v612
        %v711 = vunpack.c.l.b16 %v613
        %v712 = vunpack.c.h.b16 %v613
        %v713 = vunpack.c.l.b16 %v614
        %v714 = vunpack.c.h.b16 %v614
        %v715 = vunpack.c.l.b16 %v615
        %v716 = vunpack.c.h.b16 %v615
        %v717 = vunpack.c.l.b16 %v616
        %v718 = vunpack.c.h.b16 %v616
        %v719 = vunpack.c.l.b16 %v617
        %v720 = vunpack.c.h.b16 %v617
        %v721 = vunpack.c.l.b16 %v618
        %v722 = vunpack.c.h.b16 %v618
        %v723 = vunpack.c.l.b16 %v619
        %v724 = vunpack.c.h.b16 %v619
        %v725 = vunpack.c.l.b16 %v620
        %v726 = vunpack.c.h.b16 %v620
        %v727 = vunpack.c.l.b16 %v621
        %v728 = vunpack.c.h.b16 %v621
        %v729 = vunpack.c.l.b16 %v622
        %v730 = vunpack.c.h.b16 %v622
        %v731 = vunpack.c.l.b16 %v623
        %v732 = vunpack.c.h.b16 %v623
        %v733 = vpack.c.b16 %v671, %v669
        %v734 = vpack.c.b16 %v672, %v670
        %v735 = vpack.c.b16 %v675, %v673
        %v736 = vpack.c.b16 %v676, %v674
        %v737 = vpack.c.b16 %v679, %v677
        %v738 = vpack.c.b16 %v680, %v678
        %v739 = vpack.c.b16 %v683, %v681
        %v740 = vpack.c.b16 %v684, %v682
        %v741 = vpack.c.b16 %v687, %v685
        %v742 = vpack.c.b16 %v688, %v686
        %v743 = vpack.c.b16 %v691, %v689
        %v744 = vpack.c.b16 %v692, %v690
        %v745 = vpack.c.b16 %v695, %v693
        %v746 = vpack.c.b16 %v696, %v694
        %v747 = vpack.c.b16 %v699, %v697
        %v748 = vpack.c.b16 %v700, %v698
        %v749 = vpack.c.b16 %v703, %v701
        %v750 = vpack.c.b16 %v704, %v702
        %v751 = vpack.c.b16 %v707, %v705
        %v752 = vpack.c.b16 %v708, %v706
        %v753 = vpack.c.b16 %v711, %v709
        %v754 = vpack.c.b16 %v712, %v710
        %v755 = vpack.c.b16 %v715, %v713
        %v756 = vpack.c.b16 %v716, %v714
        %v757 = vpack.c.b16 %v719, %v717
        %v758 = vpack.c.b16 %v720, %v718
        %v759 = vpack.c.b16 %v723, %v721
        %v760 = vpack.c.b16 %v724, %v722
        %v761 = vpack.c.b16 %v727, %v725
        %v762 = vpack.c.b16 %v728, %v726
        %v763 = vpack.c.b16 %v731, %v729
        %v764 = vpack.c.b16 %v732, %v730
        %797 = vmatprep.subr.bf16.mxu0 %v734
        %798 = vmatpush1.bf16.msra.mxu0 %v733
        %799 = vmatprep.subr.bf16.mxu0 %v736
        %800 = vmatpush1.bf16.msra.mxu0 %v735
        %801 = vmatprep.subr.bf16.mxu0 %v738
        %802 = vmatpush1.bf16.msra.mxu0 %v737
        %803 = vmatprep.subr.bf16.mxu0 %v740
        %804 = vmatpush1.bf16.msra.mxu0 %v739
        %805 = vmatprep.subr.bf16.mxu0 %v742
        %806 = vmatpush1.bf16.msra.mxu0 %v741
        %807 = vmatprep.subr.bf16.mxu0 %v744
        %808 = vmatpush1.bf16.msra.mxu0 %v743
        %809 = vmatprep.subr.bf16.mxu0 %v746
        %810 = vmatpush1.bf16.msra.mxu0 %v745
        %811 = vmatprep.subr.bf16.mxu0 %v748
        %812 = vmatpush1.bf16.msra.mxu0 %v747
        %813 = vmatprep.subr.bf16.mxu0 %v750
        %814 = vmatpush1.bf16.msra.mxu0 %v749
        %815 = vmatprep.subr.bf16.mxu0 %v752
        %816 = vmatpush1.bf16.msra.mxu0 %v751
        %817 = vmatprep.subr.bf16.mxu0 %v754
        %818 = vmatpush1.bf16.msra.mxu0 %v753
        %819 = vmatprep.subr.bf16.mxu0 %v756
        %820 = vmatpush1.bf16.msra.mxu0 %v755
        %821 = vmatprep.subr.bf16.mxu0 %v758
        %822 = vmatpush1.bf16.msra.mxu0 %v757
        %823 = vmatprep.subr.bf16.mxu0 %v760
        %824 = vmatpush1.bf16.msra.mxu0 %v759
        %825 = vmatprep.subr.bf16.mxu0 %v762
        %826 = vmatpush1.bf16.msra.mxu0 %v761
        %827 = vmatprep.subr.bf16.mxu0 %v764
        %828 = vmatpush1.bf16.msra.mxu0 %v763
        %829 = vmatprep.mubr.bf16.mxu0 %v297
        %830 = vmatmul.mubr.bf16.gmra.mrb[0].mxu0 %v296
        %v831 = vpop.f32.mrb[0].mxu0
        %v832 = vadd.f32 %v630, %v831
        %v833 = vpop.f32.mrb[0].mxu0
        %v834 = vadd.f32 %v634, %v833
        %v835 = vpop.f32.mrb[0].mxu0
        %v836 = vadd.f32 %v630, %v835
        %v837 = vpop.f32.mrb[0].mxu0
        %v838 = vadd.f32 %v634, %v837
        %839 = vdwg.mxu0
        %v840 = vtanh.pop %v832
        %v841 = vtanh.pop %v834
        %v842 = vtanh.pop %v836
        %v843 = vtanh.pop %v838
        %s844 = scalar_lea.vmem %s3, 2
        %v845 = vld [vmem:[%s844] sm:$0x3]
        %v847 = vlaneseq
        %v848 = vshrl.u32 %v847, 7
        %v849 = vsub.s32 0, %v848
        %v850 = vrot.slane %v845, %v849
        %v851 = vlaneseq
        %v852 = vshrl.u32 %v851, 7
        %v853 = vsub.s32 1, %v852
        %v854 = vrot.slane %v845, %v853
        %857 = vmatprep.subr.mxu0 %v841
        %858 = vmatpush1.xpose.msra.mxu0 %v840
        %859 = vmatprep.subr.mxu0 %v843
        %860 = vmatpush1.xpose.msra.mxu0 %v842
        %861 = vmatprep.subr.mxu0 0.0
        %862 = vmatpush1.xpose.msra.mxu0 0.0
        %863 = vmatprep.subr.mxu0 0.0
        %864 = vmatpush1.xpose.msra.mxu0 0.0
        %865 = vmatprep.subr.mxu0 0.0
        %866 = vmatpush1.xpose.msra.mxu0 0.0
        %867 = vmatprep.subr.mxu0 0.0
        %868 = vmatpush1.xpose.msra.mxu0 0.0
        %869 = vmatprep.subr.mxu0 0.0
        %870 = vmatpush1.xpose.msra.mxu0 0.0
        %871 = vmatprep.subr.mxu0 0.0
        %872 = vmatpush1.xpose.msra.mxu0 0.0
        %873 = vmatprep.subr.mxu0 0.0
        %874 = vmatpush1.xpose.msra.mxu0 0.0
        %875 = vmatprep.subr.mxu0 0.0
        %876 = vmatpush1.xpose.msra.mxu0 0.0
        %877 = vmatprep.subr.mxu0 0.0
        %878 = vmatpush1.xpose.msra.mxu0 0.0
        %879 = vmatprep.subr.mxu0 0.0
        %880 = vmatpush1.xpose.msra.mxu0 0.0
        %881 = vmatprep.subr.mxu0 0.0
        %882 = vmatpush1.xpose.msra.mxu0 0.0
        %883 = vmatprep.subr.mxu0 0.0
        %884 = vmatpush1.xpose.msra.mxu0 0.0
        %885 = vmatprep.subr.mxu0 0.0
        %886 = vmatpush1.xpose.msra.mxu0 0.0
        %887 = vmatprep.subr.mxu0 0.0
        %888 = vmatpush1.xpose.msra.mxu0 0.0
        %889 = vmatprep.subr.mxu0 0.0
        %890 = vmatpush1.xpose.msra.mxu0 0.0
        %891 = vmatprep.subr.mxu0 0.0
        %892 = vmatpush1.xpose.msra.mxu0 0.0
        %893 = vmatprep.subr.mxu0 0.0
        %894 = vmatpush1.xpose.msra.mxu0 0.0
        %895 = vmatprep.subr.mxu0 0.0
        %896 = vmatpush1.xpose.msra.mxu0 0.0
        %897 = vmatprep.subr.mxu0 0.0
        %898 = vmatpush1.xpose.msra.mxu0 0.0
        %899 = vmatprep.subr.mxu0 0.0
        %900 = vmatpush1.xpose.msra.mxu0 0.0
        %901 = vmatprep.subr.mxu0 0.0
        %902 = vmatpush1.xpose.msra.mxu0 0.0
        %903 = vmatprep.subr.mxu0 0.0
        %904 = vmatpush1.xpose.msra.mxu0 0.0
        %905 = vmatprep.subr.mxu0 0.0
        %906 = vmatpush1.xpose.msra.mxu0 0.0
        %907 = vmatprep.subr.mxu0 0.0
        %908 = vmatpush1.xpose.msra.mxu0 0.0
        %909 = vmatprep.subr.mxu0 0.0
        %910 = vmatpush1.xpose.msra.mxu0 0.0
        %911 = vmatprep.subr.mxu0 0.0
        %912 = vmatpush1.xpose.msra.mxu0 0.0
        %913 = vmatprep.subr.mxu0 0.0
        %914 = vmatpush1.xpose.msra.mxu0 0.0
        %915 = vmatprep.subr.mxu0 0.0
        %916 = vmatpush1.xpose.msra.mxu0 0.0
        %917 = vmatprep.subr.mxu0 0.0
        %918 = vmatpush1.xpose.msra.mxu0 0.0
        %919 = vmatprep.subr.mxu0 0.0
        %920 = vmatpush1.xpose.msra.mxu0 0.0
        %921 = vmatprep.mubr.f32.mxu0 %v854
        %922 = vmatmul.mubr.f32.gmra.mrb[0].mxu0 %v850
        %v923 = vpop.f32.mrb[0].mxu0
        %v924 = vadd.f32 0.0, %v923
        %v925 = vpop.f32.mrb[0].mxu0
        %926 = vdwg.mxu0
        %927 = vst.msk [vmem:[%s232 + $0x1] sm:$0x1] %vm589, %v924
        %s928 = scalar_lea.vmem [#allocation2], 512
        %v929 = vld [vmem:[%s928] sm:$0xff]
        %v930 = vld [vmem:[%s928 + $0x8] sm:$0xff]
        %v931 = vld [vmem:[%s928 + $0x10] sm:$0xff]
        %v932 = vld [vmem:[%s928 + $0x18] sm:$0xff]
        %v933 = vld [vmem:[%s928 + $0x20] sm:$0xff]
        %v934 = vld [vmem:[%s928 + $0x28] sm:$0xff]
        %v935 = vld [vmem:[%s928 + $0x30] sm:$0xff]
        %v936 = vld [vmem:[%s928 + $0x38] sm:$0xff]
        %v937 = vld [vmem:[%s928 + $0x40] sm:$0xff]
        %v938 = vld [vmem:[%s928 + $0x48] sm:$0xff]
        %v939 = vld [vmem:[%s928 + $0x50] sm:$0xff]
        %v940 = vld [vmem:[%s928 + $0x58] sm:$0xff]
        %v941 = vld [vmem:[%s928 + $0x60] sm:$0xff]
        %v942 = vld [vmem:[%s928 + $0x68] sm:$0xff]
        %v943 = vld [vmem:[%s928 + $0x70] sm:$0xff]
        %v944 = vld [vmem:[%s928 + $0x78] sm:$0xff]
        %v945 = vld [vmem:[%s928 + $0x80] sm:$0xff]
        %v946 = vld [vmem:[%s928 + $0x88] sm:$0xff]
        %v947 = vld [vmem:[%s928 + $0x90] sm:$0xff]
        %v948 = vld [vmem:[%s928 + $0x98] sm:$0xff]
        %v949 = vld [vmem:[%s928 + $0xa0] sm:$0xff]
        %v950 = vld [vmem:[%s928 + $0xa8] sm:$0xff]
        %v951 = vld [vmem:[%s928 + $0xb0] sm:$0xff]
        %v952 = vld [vmem:[%s928 + $0xb8] sm:$0xff]
        %v953 = vld [vmem:[%s928 + $0xc0] sm:$0xff]
        %v954 = vld [vmem:[%s928 + $0xc8] sm:$0xff]
        %v955 = vld [vmem:[%s928 + $0xd0] sm:$0xff]
        %v956 = vld [vmem:[%s928 + $0xd8] sm:$0xff]
        %v957 = vld [vmem:[%s928 + $0xe0] sm:$0xff]
        %v958 = vld [vmem:[%s928 + $0xe8] sm:$0xff]
        %v959 = vld [vmem:[%s928 + $0xf0] sm:$0xff]
        %v960 = vld [vmem:[%s928 + $0xf8] sm:$0xff]
        %s961 = scalar_lea.vmem %s2, 4
        %v962 = vld [vmem:[%s961] sm:$0x3]
        %v964 = vlaneseq
        %v965 = vshrl.u32 %v964, 7
        %v966 = vsub.s32 0, %v965
        %v967 = vrot.slane %v962, %v966
        %v968 = vlaneseq
        %v969 = vshrl.u32 %v968, 7
        %v970 = vsub.s32 1, %v969
        %v971 = vrot.slane %v962, %v970
        %v1006 = vunpack.c.l.b16 %v929
        %v1007 = vunpack.c.h.b16 %v929
        %v1008 = vunpack.c.l.b16 %v930
        %v1009 = vunpack.c.h.b16 %v930
        %v1010 = vunpack.c.l.b16 %v931
        %v1011 = vunpack.c.h.b16 %v931
        %v1012 = vunpack.c.l.b16 %v932
        %v1013 = vunpack.c.h.b16 %v932
        %v1014 = vunpack.c.l.b16 %v933
        %v1015 = vunpack.c.h.b16 %v933
        %v1016 = vunpack.c.l.b16 %v934
        %v1017 = vunpack.c.h.b16 %v934
        %v1018 = vunpack.c.l.b16 %v935
        %v1019 = vunpack.c.h.b16 %v935
        %v1020 = vunpack.c.l.b16 %v936
        %v1021 = vunpack.c.h.b16 %v936
        %v1022 = vunpack.c.l.b16 %v937
        %v1023 = vunpack.c.h.b16 %v937
        %v1024 = vunpack.c.l.b16 %v938
        %v1025 = vunpack.c.h.b16 %v938
        %v1026 = vunpack.c.l.b16 %v939
        %v1027 = vunpack.c.h.b16 %v939
        %v1028 = vunpack.c.l.b16 %v940
        %v1029 = vunpack.c.h.b16 %v940
        %v1030 = vunpack.c.l.b16 %v941
        %v1031 = vunpack.c.h.b16 %v941
        %v1032 = vunpack.c.l.b16 %v942
        %v1033 = vunpack.c.h.b16 %v942
        %v1034 = vunpack.c.l.b16 %v943
        %v1035 = vunpack.c.h.b16 %v943
        %v1036 = vunpack.c.l.b16 %v944
        %v1037 = vunpack.c.h.b16 %v944
        %v1038 = vunpack.c.l.b16 %v945
        %v1039 = vunpack.c.h.b16 %v945
        %v1040 = vunpack.c.l.b16 %v946
        %v1041 = vunpack.c.h.b16 %v946
        %v1042 = vunpack.c.l.b16 %v947
        %v1043 = vunpack.c.h.b16 %v947
        %v1044 = vunpack.c.l.b16 %v948
        %v1045 = vunpack.c.h.b16 %v948
        %v1046 = vunpack.c.l.b16 %v949
        %v1047 = vunpack.c.h.b16 %v949
        %v1048 = vunpack.c.l.b16 %v950
        %v1049 = vunpack.c.h.b16 %v950
        %v1050 = vunpack.c.l.b16 %v951
        %v1051 = vunpack.c.h.b16 %v951
        %v1052 = vunpack.c.l.b16 %v952
        %v1053 = vunpack.c.h.b16 %v952
        %v1054 = vunpack.c.l.b16 %v953
        %v1055 = vunpack.c.h.b16 %v953
        %v1056 = vunpack.c.l.b16 %v954
        %v1057 = vunpack.c.h.b16 %v954
        %v1058 = vunpack.c.l.b16 %v955
        %v1059 = vunpack.c.h.b16 %v955
        %v1060 = vunpack.c.l.b16 %v956
        %v1061 = vunpack.c.h.b16 %v956
        %v1062 = vunpack.c.l.b16 %v957
        %v1063 = vunpack.c.h.b16 %v957
        %v1064 = vunpack.c.l.b16 %v958
        %v1065 = vunpack.c.h.b16 %v958
        %v1066 = vunpack.c.l.b16 %v959
        %v1067 = vunpack.c.h.b16 %v959
        %v1068 = vunpack.c.l.b16 %v960
        %v1069 = vunpack.c.h.b16 %v960
        %v1070 = vpack.c.b16 %v1008, %v1006
        %v1071 = vpack.c.b16 %v1009, %v1007
        %v1072 = vpack.c.b16 %v1012, %v1010
        %v1073 = vpack.c.b16 %v1013, %v1011
        %v1074 = vpack.c.b16 %v1016, %v1014
        %v1075 = vpack.c.b16 %v1017, %v1015
        %v1076 = vpack.c.b16 %v1020, %v1018
        %v1077 = vpack.c.b16 %v1021, %v1019
        %v1078 = vpack.c.b16 %v1024, %v1022
        %v1079 = vpack.c.b16 %v1025, %v1023
        %v1080 = vpack.c.b16 %v1028, %v1026
        %v1081 = vpack.c.b16 %v1029, %v1027
        %v1082 = vpack.c.b16 %v1032, %v1030
        %v1083 = vpack.c.b16 %v1033, %v1031
        %v1084 = vpack.c.b16 %v1036, %v1034
        %v1085 = vpack.c.b16 %v1037, %v1035
        %v1086 = vpack.c.b16 %v1040, %v1038
        %v1087 = vpack.c.b16 %v1041, %v1039
        %v1088 = vpack.c.b16 %v1044, %v1042
        %v1089 = vpack.c.b16 %v1045, %v1043
        %v1090 = vpack.c.b16 %v1048, %v1046
        %v1091 = vpack.c.b16 %v1049, %v1047
        %v1092 = vpack.c.b16 %v1052, %v1050
        %v1093 = vpack.c.b16 %v1053, %v1051
        %v1094 = vpack.c.b16 %v1056, %v1054
        %v1095 = vpack.c.b16 %v1057, %v1055
        %v1096 = vpack.c.b16 %v1060, %v1058
        %v1097 = vpack.c.b16 %v1061, %v1059
        %v1098 = vpack.c.b16 %v1064, %v1062
        %v1099 = vpack.c.b16 %v1065, %v1063
        %v1100 = vpack.c.b16 %v1068, %v1066
        %v1101 = vpack.c.b16 %v1069, %v1067
        %1134 = vmatprep.subr.bf16.mxu0 %v1071
        %1135 = vmatpush1.bf16.msra.mxu0 %v1070
        %1136 = vmatprep.subr.bf16.mxu0 %v1073
        %1137 = vmatpush1.bf16.msra.mxu0 %v1072
        %1138 = vmatprep.subr.bf16.mxu0 %v1075
        %1139 = vmatpush1.bf16.msra.mxu0 %v1074
        %1140 = vmatprep.subr.bf16.mxu0 %v1077
        %1141 = vmatpush1.bf16.msra.mxu0 %v1076
        %1142 = vmatprep.subr.bf16.mxu0 %v1079
        %1143 = vmatpush1.bf16.msra.mxu0 %v1078
        %1144 = vmatprep.subr.bf16.mxu0 %v1081
        %1145 = vmatpush1.bf16.msra.mxu0 %v1080
        %1146 = vmatprep.subr.bf16.mxu0 %v1083
        %1147 = vmatpush1.bf16.msra.mxu0 %v1082
        %1148 = vmatprep.subr.bf16.mxu0 %v1085
        %1149 = vmatpush1.bf16.msra.mxu0 %v1084
        %1150 = vmatprep.subr.bf16.mxu0 %v1087
        %1151 = vmatpush1.bf16.msra.mxu0 %v1086
        %1152 = vmatprep.subr.bf16.mxu0 %v1089
        %1153 = vmatpush1.bf16.msra.mxu0 %v1088
        %1154 = vmatprep.subr.bf16.mxu0 %v1091
        %1155 = vmatpush1.bf16.msra.mxu0 %v1090
        %1156 = vmatprep.subr.bf16.mxu0 %v1093
        %1157 = vmatpush1.bf16.msra.mxu0 %v1092
        %1158 = vmatprep.subr.bf16.mxu0 %v1095
        %1159 = vmatpush1.bf16.msra.mxu0 %v1094
        %1160 = vmatprep.subr.bf16.mxu0 %v1097
        %1161 = vmatpush1.bf16.msra.mxu0 %v1096
        %1162 = vmatprep.subr.bf16.mxu0 %v1099
        %1163 = vmatpush1.bf16.msra.mxu0 %v1098
        %1164 = vmatprep.subr.bf16.mxu0 %v1101
        %1165 = vmatpush1.bf16.msra.mxu0 %v1100
        %1166 = vmatprep.mubr.bf16.mxu0 %v297
        %1167 = vmatmul.mubr.bf16.gmra.mrb[0].mxu0 %v296
        %v1168 = vpop.f32.mrb[0].mxu0
        %v1169 = vadd.f32 %v967, %v1168
        %v1170 = vpop.f32.mrb[0].mxu0
        %v1171 = vadd.f32 %v971, %v1170
        %v1172 = vpop.f32.mrb[0].mxu0
        %v1173 = vadd.f32 %v967, %v1172
        %v1174 = vpop.f32.mrb[0].mxu0
        %v1175 = vadd.f32 %v971, %v1174
        %1176 = vdwg.mxu0
        %v1177 = vtanh.pop %v1169
        %v1178 = vtanh.pop %v1171
        %v1179 = vtanh.pop %v1173
        %v1180 = vtanh.pop %v1175
        %s1181 = scalar_lea.vmem %s3, 4
        %v1182 = vld [vmem:[%s1181] sm:$0x3]
        %v1184 = vlaneseq
        %v1185 = vshrl.u32 %v1184, 7
        %v1186 = vsub.s32 0, %v1185
        %v1187 = vrot.slane %v1182, %v1186
        %v1188 = vlaneseq
        %v1189 = vshrl.u32 %v1188, 7
        %v1190 = vsub.s32 1, %v1189
        %v1191 = vrot.slane %v1182, %v1190
        %1194 = vmatprep.subr.mxu0 %v1178
        %1195 = vmatpush1.xpose.msra.mxu0 %v1177
        %1196 = vmatprep.subr.mxu0 %v1180
        %1197 = vmatpush1.xpose.msra.mxu0 %v1179
        %1198 = vmatprep.subr.mxu0 0.0
        %1199 = vmatpush1.xpose.msra.mxu0 0.0
        %1200 = vmatprep.subr.mxu0 0.0
        %1201 = vmatpush1.xpose.msra.mxu0 0.0
        %1202 = vmatprep.subr.mxu0 0.0
        %1203 = vmatpush1.xpose.msra.mxu0 0.0
        %1204 = vmatprep.subr.mxu0 0.0
        %1205 = vmatpush1.xpose.msra.mxu0 0.0
        %1206 = vmatprep.subr.mxu0 0.0
        %1207 = vmatpush1.xpose.msra.mxu0 0.0
        %1208 = vmatprep.subr.mxu0 0.0
        %1209 = vmatpush1.xpose.msra.mxu0 0.0
        %1210 = vmatprep.subr.mxu0 0.0
        %1211 = vmatpush1.xpose.msra.mxu0 0.0
        %1212 = vmatprep.subr.mxu0 0.0
        %1213 = vmatpush1.xpose.msra.mxu0 0.0
        %1214 = vmatprep.subr.mxu0 0.0
        %1215 = vmatpush1.xpose.msra.mxu0 0.0
        %1216 = vmatprep.subr.mxu0 0.0
        %1217 = vmatpush1.xpose.msra.mxu0 0.0
        %1218 = vmatprep.subr.mxu0 0.0
        %1219 = vmatpush1.xpose.msra.mxu0 0.0
        %1220 = vmatprep.subr.mxu0 0.0
        %1221 = vmatpush1.xpose.msra.mxu0 0.0
        %1222 = vmatprep.subr.mxu0 0.0
        %1223 = vmatpush1.xpose.msra.mxu0 0.0
        %1224 = vmatprep.subr.mxu0 0.0
        %1225 = vmatpush1.xpose.msra.mxu0 0.0
        %1226 = vmatprep.subr.mxu0 0.0
        %1227 = vmatpush1.xpose.msra.mxu0 0.0
        %1228 = vmatprep.subr.mxu0 0.0
        %1229 = vmatpush1.xpose.msra.mxu0 0.0
        %1230 = vmatprep.subr.mxu0 0.0
        %1231 = vmatpush1.xpose.msra.mxu0 0.0
        %1232 = vmatprep.subr.mxu0 0.0
        %1233 = vmatpush1.xpose.msra.mxu0 0.0
        %1234 = vmatprep.subr.mxu0 0.0
        %1235 = vmatpush1.xpose.msra.mxu0 0.0
        %1236 = vmatprep.subr.mxu0 0.0
        %1237 = vmatpush1.xpose.msra.mxu0 0.0
        %1238 = vmatprep.subr.mxu0 0.0
        %1239 = vmatpush1.xpose.msra.mxu0 0.0
        %1240 = vmatprep.subr.mxu0 0.0
        %1241 = vmatpush1.xpose.msra.mxu0 0.0
        %1242 = vmatprep.subr.mxu0 0.0
        %1243 = vmatpush1.xpose.msra.mxu0 0.0
        %1244 = vmatprep.subr.mxu0 0.0
        %1245 = vmatpush1.xpose.msra.mxu0 0.0
        %1246 = vmatprep.subr.mxu0 0.0
        %1247 = vmatpush1.xpose.msra.mxu0 0.0
        %1248 = vmatprep.subr.mxu0 0.0
        %1249 = vmatpush1.xpose.msra.mxu0 0.0
        %1250 = vmatprep.subr.mxu0 0.0
        %1251 = vmatpush1.xpose.msra.mxu0 0.0
        %1252 = vmatprep.subr.mxu0 0.0
        %1253 = vmatpush1.xpose.msra.mxu0 0.0
        %1254 = vmatprep.subr.mxu0 0.0
        %1255 = vmatpush1.xpose.msra.mxu0 0.0
        %1256 = vmatprep.subr.mxu0 0.0
        %1257 = vmatpush1.xpose.msra.mxu0 0.0
        %1258 = vmatprep.mubr.f32.mxu0 %v1191
        %1259 = vmatmul.mubr.f32.gmra.mrb[0].mxu0 %v1187
        %v1260 = vpop.f32.mrb[0].mxu0
        %v1261 = vadd.f32 0.0, %v1260
        %v1262 = vpop.f32.mrb[0].mxu0
        %1263 = vdwg.mxu0
        %1264 = vst.msk [vmem:[%s232 + $0x2] sm:$0x1] %vm589, %v1261
        %s1265 = scalar_lea.vmem [#allocation2], 768
        %v1266 = vld [vmem:[%s1265] sm:$0xff]
        %v1267 = vld [vmem:[%s1265 + $0x8] sm:$0xff]
        %v1268 = vld [vmem:[%s1265 + $0x10] sm:$0xff]
        %v1269 = vld [vmem:[%s1265 + $0x18] sm:$0xff]
        %v1270 = vld [vmem:[%s1265 + $0x20] sm:$0xff]
        %v1271 = vld [vmem:[%s1265 + $0x28] sm:$0xff]
        %v1272 = vld [vmem:[%s1265 + $0x30] sm:$0xff]
        %v1273 = vld [vmem:[%s1265 + $0x38] sm:$0xff]
        %v1274 = vld [vmem:[%s1265 + $0x40] sm:$0xff]
        %v1275 = vld [vmem:[%s1265 + $0x48] sm:$0xff]
        %v1276 = vld [vmem:[%s1265 + $0x50] sm:$0xff]
        %v1277 = vld [vmem:[%s1265 + $0x58] sm:$0xff]
        %v1278 = vld [vmem:[%s1265 + $0x60] sm:$0xff]
        %v1279 = vld [vmem:[%s1265 + $0x68] sm:$0xff]
        %v1280 = vld [vmem:[%s1265 + $0x70] sm:$0xff]
        %v1281 = vld [vmem:[%s1265 + $0x78] sm:$0xff]
        %v1282 = vld [vmem:[%s1265 + $0x80] sm:$0xff]
        %v1283 = vld [vmem:[%s1265 + $0x88] sm:$0xff]
        %v1284 = vld [vmem:[%s1265 + $0x90] sm:$0xff]
        %v1285 = vld [vmem:[%s1265 + $0x98] sm:$0xff]
        %v1286 = vld [vmem:[%s1265 + $0xa0] sm:$0xff]
        %v1287 = vld [vmem:[%s1265 + $0xa8] sm:$0xff]
        %v1288 = vld [vmem:[%s1265 + $0xb0] sm:$0xff]
        %v1289 = vld [vmem:[%s1265 + $0xb8] sm:$0xff]
        %v1290 = vld [vmem:[%s1265 + $0xc0] sm:$0xff]
        %v1291 = vld [vmem:[%s1265 + $0xc8] sm:$0xff]
        %v1292 = vld [vmem:[%s1265 + $0xd0] sm:$0xff]
        %v1293 = vld [vmem:[%s1265 + $0xd8] sm:$0xff]
        %v1294 = vld [vmem:[%s1265 + $0xe0] sm:$0xff]
        %v1295 = vld [vmem:[%s1265 + $0xe8] sm:$0xff]
        %v1296 = vld [vmem:[%s1265 + $0xf0] sm:$0xff]
        %v1297 = vld [vmem:[%s1265 + $0xf8] sm:$0xff]
        %s1298 = scalar_lea.vmem %s2, 6
        %v1299 = vld [vmem:[%s1298] sm:$0x3]
        %v1301 = vlaneseq
        %v1302 = vshrl.u32 %v1301, 7
        %v1303 = vsub.s32 0, %v1302
        %v1304 = vrot.slane %v1299, %v1303
        %v1305 = vlaneseq
        %v1306 = vshrl.u32 %v1305, 7
        %v1307 = vsub.s32 1, %v1306
        %v1308 = vrot.slane %v1299, %v1307
        %v1343 = vunpack.c.l.b16 %v1266
        %v1344 = vunpack.c.h.b16 %v1266
        %v1345 = vunpack.c.l.b16 %v1267
        %v1346 = vunpack.c.h.b16 %v1267
        %v1347 = vunpack.c.l.b16 %v1268
        %v1348 = vunpack.c.h.b16 %v1268
        %v1349 = vunpack.c.l.b16 %v1269
        %v1350 = vunpack.c.h.b16 %v1269
        %v1351 = vunpack.c.l.b16 %v1270
        %v1352 = vunpack.c.h.b16 %v1270
        %v1353 = vunpack.c.l.b16 %v1271
        %v1354 = vunpack.c.h.b16 %v1271
        %v1355 = vunpack.c.l.b16 %v1272
        %v1356 = vunpack.c.h.b16 %v1272
        %v1357 = vunpack.c.l.b16 %v1273
        %v1358 = vunpack.c.h.b16 %v1273
        %v1359 = vunpack.c.l.b16 %v1274
        %v1360 = vunpack.c.h.b16 %v1274
        %v1361 = vunpack.c.l.b16 %v1275
        %v1362 = vunpack.c.h.b16 %v1275
        %v1363 = vunpack.c.l.b16 %v1276
        %v1364 = vunpack.c.h.b16 %v1276
        %v1365 = vunpack.c.l.b16 %v1277
        %v1366 = vunpack.c.h.b16 %v1277
        %v1367 = vunpack.c.l.b16 %v1278
        %v1368 = vunpack.c.h.b16 %v1278
        %v1369 = vunpack.c.l.b16 %v1279
        %v1370 = vunpack.c.h.b16 %v1279
        %v1371 = vunpack.c.l.b16 %v1280
        %v1372 = vunpack.c.h.b16 %v1280
        %v1373 = vunpack.c.l.b16 %v1281
        %v1374 = vunpack.c.h.b16 %v1281
        %v1375 = vunpack.c.l.b16 %v1282
        %v1376 = vunpack.c.h.b16 %v1282
        %v1377 = vunpack.c.l.b16 %v1283
        %v1378 = vunpack.c.h.b16 %v1283
        %v1379 = vunpack.c.l.b16 %v1284
        %v1380 = vunpack.c.h.b16 %v1284
        %v1381 = vunpack.c.l.b16 %v1285
        %v1382 = vunpack.c.h.b16 %v1285
        %v1383 = vunpack.c.l.b16 %v1286
        %v1384 = vunpack.c.h.b16 %v1286
        %v1385 = vunpack.c.l.b16 %v1287
        %v1386 = vunpack.c.h.b16 %v1287
        %v1387 = vunpack.c.l.b16 %v1288
        %v1388 = vunpack.c.h.b16 %v1288
        %v1389 = vunpack.c.l.b16 %v1289
        %v1390 = vunpack.c.h.b16 %v1289
        %v1391 = vunpack.c.l.b16 %v1290
        %v1392 = vunpack.c.h.b16 %v1290
        %v1393 = vunpack.c.l.b16 %v1291
        %v1394 = vunpack.c.h.b16 %v1291
        %v1395 = vunpack.c.l.b16 %v1292
        %v1396 = vunpack.c.h.b16 %v1292
        %v1397 = vunpack.c.l.b16 %v1293
        %v1398 = vunpack.c.h.b16 %v1293
        %v1399 = vunpack.c.l.b16 %v1294
        %v1400 = vunpack.c.h.b16 %v1294
        %v1401 = vunpack.c.l.b16 %v1295
        %v1402 = vunpack.c.h.b16 %v1295
        %v1403 = vunpack.c.l.b16 %v1296
        %v1404 = vunpack.c.h.b16 %v1296
        %v1405 = vunpack.c.l.b16 %v1297
        %v1406 = vunpack.c.h.b16 %v1297
        %v1407 = vpack.c.b16 %v1345, %v1343
        %v1408 = vpack.c.b16 %v1346, %v1344
        %v1409 = vpack.c.b16 %v1349, %v1347
        %v1410 = vpack.c.b16 %v1350, %v1348
        %v1411 = vpack.c.b16 %v1353, %v1351
        %v1412 = vpack.c.b16 %v1354, %v1352
        %v1413 = vpack.c.b16 %v1357, %v1355
        %v1414 = vpack.c.b16 %v1358, %v1356
        %v1415 = vpack.c.b16 %v1361, %v1359
        %v1416 = vpack.c.b16 %v1362, %v1360
        %v1417 = vpack.c.b16 %v1365, %v1363
        %v1418 = vpack.c.b16 %v1366, %v1364
        %v1419 = vpack.c.b16 %v1369, %v1367
        %v1420 = vpack.c.b16 %v1370, %v1368
        %v1421 = vpack.c.b16 %v1373, %v1371
        %v1422 = vpack.c.b16 %v1374, %v1372
        %v1423 = vpack.c.b16 %v1377, %v1375
        %v1424 = vpack.c.b16 %v1378, %v1376
        %v1425 = vpack.c.b16 %v1381, %v1379
        %v1426 = vpack.c.b16 %v1382, %v1380
        %v1427 = vpack.c.b16 %v1385, %v1383
        %v1428 = vpack.c.b16 %v1386, %v1384
        %v1429 = vpack.c.b16 %v1389, %v1387
        %v1430 = vpack.c.b16 %v1390, %v1388
        %v1431 = vpack.c.b16 %v1393, %v1391
        %v1432 = vpack.c.b16 %v1394, %v1392
        %v1433 = vpack.c.b16 %v1397, %v1395
        %v1434 = vpack.c.b16 %v1398, %v1396
        %v1435 = vpack.c.b16 %v1401, %v1399
        %v1436 = vpack.c.b16 %v1402, %v1400
        %v1437 = vpack.c.b16 %v1405, %v1403
        %v1438 = vpack.c.b16 %v1406, %v1404
        %1471 = vmatprep.subr.bf16.mxu0 %v1408
        %1472 = vmatpush1.bf16.msra.mxu0 %v1407
        %1473 = vmatprep.subr.bf16.mxu0 %v1410
        %1474 = vmatpush1.bf16.msra.mxu0 %v1409
        %1475 = vmatprep.subr.bf16.mxu0 %v1412
        %1476 = vmatpush1.bf16.msra.mxu0 %v1411
        %1477 = vmatprep.subr.bf16.mxu0 %v1414
        %1478 = vmatpush1.bf16.msra.mxu0 %v1413
        %1479 = vmatprep.subr.bf16.mxu0 %v1416
        %1480 = vmatpush1.bf16.msra.mxu0 %v1415
        %1481 = vmatprep.subr.bf16.mxu0 %v1418
        %1482 = vmatpush1.bf16.msra.mxu0 %v1417
        %1483 = vmatprep.subr.bf16.mxu0 %v1420
        %1484 = vmatpush1.bf16.msra.mxu0 %v1419
        %1485 = vmatprep.subr.bf16.mxu0 %v1422
        %1486 = vmatpush1.bf16.msra.mxu0 %v1421
        %1487 = vmatprep.subr.bf16.mxu0 %v1424
        %1488 = vmatpush1.bf16.msra.mxu0 %v1423
        %1489 = vmatprep.subr.bf16.mxu0 %v1426
        %1490 = vmatpush1.bf16.msra.mxu0 %v1425
        %1491 = vmatprep.subr.bf16.mxu0 %v1428
        %1492 = vmatpush1.bf16.msra.mxu0 %v1427
        %1493 = vmatprep.subr.bf16.mxu0 %v1430
        %1494 = vmatpush1.bf16.msra.mxu0 %v1429
        %1495 = vmatprep.subr.bf16.mxu0 %v1432
        %1496 = vmatpush1.bf16.msra.mxu0 %v1431
        %1497 = vmatprep.subr.bf16.mxu0 %v1434
        %1498 = vmatpush1.bf16.msra.mxu0 %v1433
        %1499 = vmatprep.subr.bf16.mxu0 %v1436
        %1500 = vmatpush1.bf16.msra.mxu0 %v1435
        %1501 = vmatprep.subr.bf16.mxu0 %v1438
        %1502 = vmatpush1.bf16.msra.mxu0 %v1437
        %1503 = vmatprep.mubr.bf16.mxu0 %v297
        %1504 = vmatmul.mubr.bf16.gmra.mrb[0].mxu0 %v296
        %v1505 = vpop.f32.mrb[0].mxu0
        %v1506 = vadd.f32 %v1304, %v1505
        %v1507 = vpop.f32.mrb[0].mxu0
        %v1508 = vadd.f32 %v1308, %v1507
        %v1509 = vpop.f32.mrb[0].mxu0
        %v1510 = vadd.f32 %v1304, %v1509
        %v1511 = vpop.f32.mrb[0].mxu0
        %v1512 = vadd.f32 %v1308, %v1511
        %1513 = vdwg.mxu0
        %v1514 = vtanh.pop %v1506
        %v1515 = vtanh.pop %v1508
        %v1516 = vtanh.pop %v1510
        %v1517 = vtanh.pop %v1512
        %s1518 = scalar_lea.vmem %s3, 6
        %v1519 = vld [vmem:[%s1518] sm:$0x3]
        %v1521 = vlaneseq
        %v1522 = vshrl.u32 %v1521, 7
        %v1523 = vsub.s32 0, %v1522
        %v1524 = vrot.slane %v1519, %v1523
        %v1525 = vlaneseq
        %v1526 = vshrl.u32 %v1525, 7
        %v1527 = vsub.s32 1, %v1526
        %v1528 = vrot.slane %v1519, %v1527
        %1531 = vmatprep.subr.mxu0 %v1515
        %1532 = vmatpush1.xpose.msra.mxu0 %v1514
        %1533 = vmatprep.subr.mxu0 %v1517
        %1534 = vmatpush1.xpose.msra.mxu0 %v1516
        %1535 = vmatprep.subr.mxu0 0.0
        %1536 = vmatpush1.xpose.msra.mxu0 0.0
        %1537 = vmatprep.subr.mxu0 0.0
        %1538 = vmatpush1.xpose.msra.mxu0 0.0
        %1539 = vmatprep.subr.mxu0 0.0
        %1540 = vmatpush1.xpose.msra.mxu0 0.0
        %1541 = vmatprep.subr.mxu0 0.0
        %1542 = vmatpush1.xpose.msra.mxu0 0.0
        %1543 = vmatprep.subr.mxu0 0.0
        %1544 = vmatpush1.xpose.msra.mxu0 0.0
        %1545 = vmatprep.subr.mxu0 0.0
        %1546 = vmatpush1.xpose.msra.mxu0 0.0
        %1547 = vmatprep.subr.mxu0 0.0
        %1548 = vmatpush1.xpose.msra.mxu0 0.0
        %1549 = vmatprep.subr.mxu0 0.0
        %1550 = vmatpush1.xpose.msra.mxu0 0.0
        %1551 = vmatprep.subr.mxu0 0.0
        %1552 = vmatpush1.xpose.msra.mxu0 0.0
        %1553 = vmatprep.subr.mxu0 0.0
        %1554 = vmatpush1.xpose.msra.mxu0 0.0
        %1555 = vmatprep.subr.mxu0 0.0
        %1556 = vmatpush1.xpose.msra.mxu0 0.0
        %1557 = vmatprep.subr.mxu0 0.0
        %1558 = vmatpush1.xpose.msra.mxu0 0.0
        %1559 = vmatprep.subr.mxu0 0.0
        %1560 = vmatpush1.xpose.msra.mxu0 0.0
        %1561 = vmatprep.subr.mxu0 0.0
        %1562 = vmatpush1.xpose.msra.mxu0 0.0
        %1563 = vmatprep.subr.mxu0 0.0
        %1564 = vmatpush1.xpose.msra.mxu0 0.0
        %1565 = vmatprep.subr.mxu0 0.0
        %1566 = vmatpush1.xpose.msra.mxu0 0.0
        %1567 = vmatprep.subr.mxu0 0.0
        %1568 = vmatpush1.xpose.msra.mxu0 0.0
        %1569 = vmatprep.subr.mxu0 0.0
        %1570 = vmatpush1.xpose.msra.mxu0 0.0
        %1571 = vmatprep.subr.mxu0 0.0
        %1572 = vmatpush1.xpose.msra.mxu0 0.0
        %1573 = vmatprep.subr.mxu0 0.0
        %1574 = vmatpush1.xpose.msra.mxu0 0.0
        %1575 = vmatprep.subr.mxu0 0.0
        %1576 = vmatpush1.xpose.msra.mxu0 0.0
        %1577 = vmatprep.subr.mxu0 0.0
        %1578 = vmatpush1.xpose.msra.mxu0 0.0
        %1579 = vmatprep.subr.mxu0 0.0
        %1580 = vmatpush1.xpose.msra.mxu0 0.0
        %1581 = vmatprep.subr.mxu0 0.0
        %1582 = vmatpush1.xpose.msra.mxu0 0.0
        %1583 = vmatprep.subr.mxu0 0.0
        %1584 = vmatpush1.xpose.msra.mxu0 0.0
        %1585 = vmatprep.subr.mxu0 0.0
        %1586 = vmatpush1.xpose.msra.mxu0 0.0
        %1587 = vmatprep.subr.mxu0 0.0
        %1588 = vmatpush1.xpose.msra.mxu0 0.0
        %1589 = vmatprep.subr.mxu0 0.0
        %1590 = vmatpush1.xpose.msra.mxu0 0.0
        %1591 = vmatprep.subr.mxu0 0.0
        %1592 = vmatpush1.xpose.msra.mxu0 0.0
        %1593 = vmatprep.subr.mxu0 0.0
        %1594 = vmatpush1.xpose.msra.mxu0 0.0
        %1595 = vmatprep.mubr.f32.mxu0 %v1528
        %1596 = vmatmul.mubr.f32.gmra.mrb[0].mxu0 %v1524
        %v1597 = vpop.f32.mrb[0].mxu0
        %v1598 = vadd.f32 0.0, %v1597
        %v1599 = vpop.f32.mrb[0].mxu0
        %1600 = vdwg.mxu0
        %1601 = vst.msk [vmem:[%s232 + $0x3] sm:$0x1] %vm589, %v1598
        %s1602 = sand.u32 %s132, 1
        %s1603 = scalar_lea.sflag [#allocation4], %s1602
        %s1604 = sand.u32 %s132, 1
        %s1605 = smul.addr %s1604, 4
        %s1606 = scalar_lea.vmem [#allocation5], %s1605
        // Predicated region
        $region41: #{lora_head_forward.1} parent=35 // pred_check
          %p1607 = pneg %p142
        $region42: #{lora_head_forward.1} parent=35 // pred_check_branch
          %1609 = sbr.rel (%p1607) target = $region44
        $region43: #{lora_head_forward.1} parent=35 // pred_region
          %s1611 = ssub.s32 64, 64
          %1612 = vsyncadd %s1603, %s1611
          %s1613 = sadd.s32 %s24, %s23
          %s1614 = smul.addr %s1613, 64
          %s1615 = scalar_lea.hbm %s4, %s1614
          %s1617 = sshll.u32 %s1606, 4
          %s1618 = int_to_ptr.vmem [resolvable:$true] %s1617
          %1620 = dma.vmem_to_hbm [thread:$0]  %s1618, 64, %s1615, %s1603
        $region44: #{lora_head_forward.1} parent=35 // pred_fallthru
          _
      $region36: #{lora_head_forward.1} parent=5 // pred_fallthru
        _
      %p1621 = scmp.le.s32.totalorder 2, %s14
      // Predicated region
      $region45: #{lora_head_forward.1} parent=5 // pred_check
        %p1622 = pneg %p1621
      $region46: #{lora_head_forward.1} parent=5 // pred_check_branch
        %1624 = sbr.rel (%p1622) target = $region48
      $region47: #{lora_head_forward.1} parent=5 // pred_region
        %s1625 = ssub.s32 %s14, 2
        // Predicated region
        $region49: #{lora_head_forward.1} parent=47 // pred_check
          %p1626 = pneg %p148
        $region50: #{lora_head_forward.1} parent=47 // pred_check_branch
          %1628 = sbr.rel (%p1626) target = $region52
        $region51: #{lora_head_forward.1} parent=47 // pred_region
          %s1629 = sand.u32 %s133, 1
          %s1630 = scalar_lea.sflag [#allocation4], %s1629
          %s1631 = sand.u32 %s133, 1
          %s1632 = smul.addr %s1631, 4
          %s1633 = scalar_lea.vmem [#allocation5], %s1632
          %1634 = dma.done %s1630, 64
        $region52: #{lora_head_forward.1} parent=47 // pred_fallthru
          _
      $region48: #{lora_head_forward.1} parent=5 // pred_fallthru
        _
    $region6: #{lora_head_forward.1} parent=1 // loop_footer
      %s18 = sadd.s32 1, %s14
    $region7: #{lora_head_forward.1} parent=1 // loop_footer_branch
      %13 = sbr.rel target = $region3
    $region8: #{lora_head_forward.1} parent=1 // loop_exit
      _
    %1635 = vsyncpa [#allocation3], 1
    %s1636 = scalar_lea.sflag [#allocation3], 1
    %1637 = vsyncpa %s1636, 1
    %1638 = vsyncpa [#allocation4], 1
    %s1639 = scalar_lea.sflag [#allocation4], 1
    %1640 = vsyncpa %s1639, 1

</llo_original>
